<compile_context>
chip_gen: v7x
topology: tpu7x:2x2x1
jax: 0.10.0
libtpu: 0.0.40
codegen_flags: <defaults>
</compile_context>

<pallas_src>
import jax
import jax.numpy as jnp
from jax.experimental import pallas as pl
from jax.experimental.pallas import tpu as pltpu


def _lfi_kernel(x_ref, idx_ref, o_ref):
    # x_ref:   (1, N, D)     VMEM, resident across the n-tile grid axis
    # idx_ref: (1, TN, K)    VMEM int32
    # o_ref:   (1, TN, K*D)  VMEM
    _, n_pts, _ = x_ref.shape
    _, tn, k = idx_ref.shape

    x = x_ref[0]                       # (N, D)
    idx = idx_ref[0]                   # (TN, K) int32

    # Tiny (1, N) column iota; broadcast against the index column.
    col = jax.lax.broadcasted_iota(jnp.int32, (1, n_pts), 1)

    # Stack the K index columns along sublanes -> (K*TN, 1):
    # row j*TN + i holds refer_idx[i, j].
    sel = jnp.concatenate([idx[:, j:j + 1] for j in range(k)], axis=0)

    # Fused one-hot for all K neighbors, built directly in x's dtype
    # (exact 0/1 mask; no separate f32 intermediate).
    onehot = (sel == col).astype(x.dtype)                          # (K*TN, N)

    # Single MXU pass per tile, f32 accumulate.
    res = jnp.dot(onehot, x, preferred_element_type=jnp.float32)   # (K*TN, D)

    # Re-layout to (TN, K*D) with a lane concat, then one dense store.
    out = jnp.concatenate(
        [res[j * tn:(j + 1) * tn] for j in range(k)], axis=-1)     # (TN, K*D)
    o_ref[0] = out.astype(o_ref.dtype)


def _pick_tile(n, target=256):
    """Largest divisor of n that is a multiple of 8 and <= target (else n)."""
    if n <= target:
        return n
    for tn in range(min(target, n), 7, -1):
        if n % tn == 0 and tn % 8 == 0:
            return tn
    return n


def lfi_pallas(x, refer_idx, *, tile_n=None):
    """x: (B, N, D) (trailing size-1 dims squeezed), refer_idx: (B, N, K) int,
    values in [0, N). Returns (B, N, K*D)."""
    if x.ndim > 3:
        x = x.reshape(x.shape[:3])
    B, N, D = x.shape
    K = refer_idx.shape[-1]
    refer_idx = refer_idx.astype(jnp.int32)

    TN = tile_n if tile_n is not None else _pick_tile(N)
    assert N % TN == 0, (N, TN)
    num_tiles = N // TN

    itemsize = jnp.dtype(x.dtype).itemsize
    flops = 2 * B * K * N * N * D                      # one-hot matmul flops
    bytes_accessed = (B * N * D * itemsize             # x
                      + B * N * K * 4                  # refer_idx
                      + B * N * K * D * itemsize)      # out

    return pl.pallas_call(
        _lfi_kernel,
        out_shape=jax.ShapeDtypeStruct((B, N, K * D), x.dtype),
        grid_spec=pltpu.PrefetchScalarGridSpec(
            num_scalar_prefetch=0,
            grid=(B, num_tiles),
            in_specs=[
                # full-N x block, resident across the n-tile axis
                pl.BlockSpec((1, N, D), lambda b, n: (b, 0, 0)),
                pl.BlockSpec((1, TN, K), lambda b, n: (b, n, 0)),
            ],
            out_specs=pl.BlockSpec((1, TN, K * D), lambda b, n: (b, n, 0)),
        ),
        compiler_params=pltpu.CompilerParams(
            dimension_semantics=("parallel", "parallel"),
            vmem_limit_bytes=32 * 1024 * 1024,
        ),
        cost_estimate=pl.CostEstimate(
            flops=int(flops),
            transcendentals=0,
            bytes_accessed=int(bytes_accessed),
        ),
    )(x, refer_idx)


def lfi_reference(x, refer_idx):
    # pure-JAX reference of get_local_feature (per-batch gather + concat)
    if x.ndim > 3:
        x = x.reshape(x.shape[:3])
    B, N, D = x.shape
    K = refer_idx.shape[-1]
    gathered = x[jnp.arange(B)[:, None, None], refer_idx]   # (B, N, K, D)
    return gathered.reshape(B, N, K * D)


if __name__ == "__main__":
    # K*D = 128 -> lane-dense output store; N tiles into 2 blocks of TN=128.
    B, N, D, K = 2, 256, 32, 4

    key = jax.random.PRNGKey(0)
    kx, ki = jax.random.split(key)
    x = jax.random.normal(kx, (B, N, D), dtype=jnp.float32)
    refer_idx = jax.random.randint(ki, (B, N, K), 0, N, dtype=jnp.int32)

    out = jax.block_until_ready(lfi_pallas(x, refer_idx, tile_n=128))

    ref = lfi_reference(x, refer_idx)
    assert out.shape == (B, N, K * D), out.shape
    assert jnp.allclose(out, ref, atol=1e-6), "mismatch vs reference"

    print("KERNEL_OK")
</pallas_src>

<mosaic_0001>
module attributes {stable_mosaic.version = 11 : i64} {
  func.func @_lfi_kernel(%arg0: i32, %arg1: i32, %arg2: memref<1x256x32xf32, #tpu.memory_space<vmem>>, %arg3: memref<1x128x4xi32, #tpu.memory_space<vmem>>, %arg4: memref<1x128x128xf32, #tpu.memory_space<vmem>>) attributes {dimension_semantics = [#tpu.dimension_semantics<parallel>, #tpu.dimension_semantics<parallel>], iteration_bounds = array<i64: 2, 2>, scalar_prefetch = 0 : i64, scratch_operands = 0 : i64, tpu.core_type = #tpu.core_type<tc>, window_params = [{transform_indices = @transform_0, window_bounds = array<i64: 1, 256, 32>}, {transform_indices = @transform_1, window_bounds = array<i64: 1, 128, 4>}, {transform_indices = @transform_2, window_bounds = array<i64: 1, 128, 128>}]} {
    %c0 = arith.constant 0 : index
    %c0_0 = arith.constant 0 : index
    %c0_1 = arith.constant 0 : index
    %0 = vector.load %arg2[%c0, %c0_0, %c0_1] : memref<1x256x32xf32, #tpu.memory_space<vmem>>, vector<1x256x32xf32>
    %1 = vector.shape_cast %0 : vector<1x256x32xf32> to vector<256x32xf32>
    %c0_2 = arith.constant 0 : index
    %c0_3 = arith.constant 0 : index
    %c0_4 = arith.constant 0 : index
    %2 = vector.load %arg3[%c0_2, %c0_3, %c0_4] : memref<1x128x4xi32, #tpu.memory_space<vmem>>, vector<1x128x4xi32>
    %3 = vector.shape_cast %2 : vector<1x128x4xi32> to vector<128x4xi32>
    %4 = tpu.iota {dimensions = array<i32: 1>} : vector<1x256xi32>
    %5 = vector.extract_strided_slice %3 {offsets = [0, 0], sizes = [128, 1], strides = [1, 1]} : vector<128x4xi32> to vector<128x1xi32>
    %6 = vector.extract_strided_slice %3 {offsets = [0, 1], sizes = [128, 1], strides = [1, 1]} : vector<128x4xi32> to vector<128x1xi32>
    %7 = vector.extract_strided_slice %3 {offsets = [0, 2], sizes = [128, 1], strides = [1, 1]} : vector<128x4xi32> to vector<128x1xi32>
    %8 = vector.extract_strided_slice %3 {offsets = [0, 3], sizes = [128, 1], strides = [1, 1]} : vector<128x4xi32> to vector<128x1xi32>
    %9 = tpu.concatenate %5, %6, %7, %8 in 0 : vector<128x1xi32>, vector<128x1xi32>, vector<128x1xi32>, vector<128x1xi32> -> vector<512x1xi32>
    %10 = vector.broadcast %9 : vector<512x1xi32> to vector<512x256xi32>
    %11 = vector.broadcast %4 : vector<1x256xi32> to vector<512x256xi32>
    %12 = arith.cmpi eq, %10, %11 : vector<512x256xi32>
    %13 = arith.extui %12 : vector<512x256xi1> to vector<512x256xi32>
    %14 = arith.sitofp %13 : vector<512x256xi32> to vector<512x256xf32>
    %cst = arith.constant dense<0.000000e+00> : vector<512x32xf32>
    %15 = tpu.matmul %14, %1, %cst {dimension_numbers = #tpu.dot_dimension_numbers<[1], [0], [0], [1], [0, 0, 1, 1], [], []>} : vector<512x256xf32>, vector<256x32xf32>, vector<512x32xf32> -> vector<512x32xf32>
    %16 = vector.extract_strided_slice %15 {offsets = [0, 0], sizes = [128, 32], strides = [1, 1]} : vector<512x32xf32> to vector<128x32xf32>
    %17 = vector.extract_strided_slice %15 {offsets = [128, 0], sizes = [128, 32], strides = [1, 1]} : vector<512x32xf32> to vector<128x32xf32>
    %18 = vector.extract_strided_slice %15 {offsets = [256, 0], sizes = [128, 32], strides = [1, 1]} : vector<512x32xf32> to vector<128x32xf32>
    %19 = vector.extract_strided_slice %15 {offsets = [384, 0], sizes = [128, 32], strides = [1, 1]} : vector<512x32xf32> to vector<128x32xf32>
    %20 = tpu.concatenate %16, %17, %18, %19 in 1 : vector<128x32xf32>, vector<128x32xf32>, vector<128x32xf32>, vector<128x32xf32> -> vector<128x128xf32>
    %c0_5 = arith.constant 0 : index
    %c0_6 = arith.constant 0 : index
    %c0_7 = arith.constant 0 : index
    %21 = vector.load %arg4[%c0_5, %c0_6, %c0_7] : memref<1x128x128xf32, #tpu.memory_space<vmem>>, vector<1x128x128xf32>
    %22 = vector.shape_cast %21 : vector<1x128x128xf32> to vector<128x128xf32>
    %23 = vector.shape_cast %20 : vector<128x128xf32> to vector<1x128x128xf32>
    tpu.vector_store %arg4[%c0_5, %c0_6, %c0_7], %23 {strides = array<i32>} : memref<1x128x128xf32, #tpu.memory_space<vmem>>, vector<1x128x128xf32>,
    return
  }
  func.func @transform_0(%arg0: i32, %arg1: i32) -> (i32, i32, i32) {
    %c0_i32 = arith.constant 0 : i32
    %c0_i32_0 = arith.constant 0 : i32
    %c0_i32_1 = arith.constant 0 : i32
    return %arg0, %c0_i32, %c0_i32_0 : i32, i32, i32
  }
  func.func @transform_1(%arg0: i32, %arg1: i32) -> (i32, i32, i32) {
    %c0_i32 = arith.constant 0 : i32
    %c0_i32_0 = arith.constant 0 : i32
    return %arg0, %arg1, %c0_i32 : i32, i32, i32
  }
  func.func @transform_2(%arg0: i32, %arg1: i32) -> (i32, i32, i32) {
    %c0_i32 = arith.constant 0 : i32
    %c0_i32_0 = arith.constant 0 : i32
    return %arg0, %arg1, %c0_i32 : i32, i32, i32
  }
}

</mosaic_0001>

<llo_original>
// kernel: tpu_custom_call.1
$region0: #{tpu_custom_call.1}
  #allocation0 [shape = 'u32[]', space=smem, size = 0x4, offset = 0x4, fixed_abs, tag = 'smem constant byte address 0x4 - core index']
  #allocation1 [shape = 'u32[144,128]{1,0:T(1,128)}', space=vmem, size = 0x12000, scoped, tag = 'internal scratch']
  %s0 = inlined_call_operand.vmem [shape: f32[2,256,32], index: 0, kind: input, shape index: {}]
  %s1 = inlined_call_operand.vmem [shape: s32[2,256,4], index: 1, kind: input, shape index: {}]
  %s2 = inlined_call_operand.hbm [shape: f32[2,256,128], index: 2, kind: output, shape index: {}]
  %s3 = sld [smem:[#allocation0]]
  $region41: #{tpu_custom_call.1} parent=0
    _
  %s5 = ssub.s32 1, %s3
  %s6 = scalar_select 0, %s5, %s3
  $region1: #{tpu_custom_call.1} parent=0
    #allocation2 [shape = 'u8[131072]{0}', space=vmem, size = 0x20000, scoped, tag = 'output window, operand 0']
    #allocation3 [shape = 's32[2]{0}', space=sflag, size = 0x8, scoped, tag = 'scoped memory for tpu_custom_call.1']
    %7 = vsyncpa [#allocation3], 0
    %s8 = scalar_lea.sflag [#allocation3], 1
    %9 = vsyncpa %s8, 0
    loop: start=0, step=1, limit=6
    $region2: #{tpu_custom_call.1} parent=1 // loop_pre_header
      _
    $region3: #{tpu_custom_call.1} parent=1 // loop_header
      %s11 = sphi 0, %s15
      %p12 = scmp.ge.s32.totalorder %s11, 6
      %s18 = sphi 0, %s30
      %s19 = sphi 0, %s26
      %s20 = sphi 0, %s18
      %s21 = sphi 0, %s19
      %s22 = sphi 0, %s20
      %s23 = sphi 0, %s21
      %s33 = sphi 0, %s35
      %s36 = sphi 0, %s33
      %s37 = sphi 0, %s36
      %s53 = sphi 0, %s37
      %s61 = sphi 0, %s63
      %s64 = sphi 0, %s61
      %s65 = sphi 0, %s64
      %s81 = sphi 0, %s65
      %s89 = sphi 0, %s91
      %s92 = sphi 0, %s89
      %s93 = sphi 0, %s92
      %s109 = sphi 0, %s93
    $region4: #{tpu_custom_call.1} parent=1 // loop_header_branch
      %14 = sbr.rel (%p12) target = $region8
    $region5: #{tpu_custom_call.1} parent=1 // loop_body
      %s16 = ssub.s32 %s11, 1
      %s17 = ssub.s32 %s11, 2
      %s24 = sadd.s32 1, %s19
      %p25 = scmp.ge.s32.totalorder %s24, 2
      %s26 = scalar_select %p25, 0, %s24
      %s27 = sadd.s32 1, %s18
      %s28 = scalar_select %p25, %s27, %s18
      %p29 = scmp.ge.s32.totalorder %s28, 2
      %s30 = scalar_select %p29, 0, %s28
      %s31 = ssub.s32 %s18, %s30
      %p32 = scmp.eq.s32.totalorder %s31, 0
      %s34 = sadd.s32 %s33, 1
      %s35 = scalar_select %p32, %s33, %s34
      %p38 = pneg %p32
      %p39 = scmp.eq.s32.totalorder %s11, 3
      %p40 = por %p38, %p39
      %p41 = scmp.ne.s32.totalorder %s33, %s36
      %p42 = scmp.eq.s32.totalorder %s11, 0
      %p43 = por %p41, %p42
      %p44 = scmp.ne.s32.totalorder %s33, %s36
      %p45 = scmp.eq.s32.totalorder %s16, 3
      %p46 = por %p44, %p45
      %p47 = scmp.ne.s32.totalorder %s36, %s37
      %p48 = scmp.eq.s32.totalorder %s16, 0
      %p49 = por %p47, %p48
      %p50 = scmp.ne.s32.totalorder %s36, %s37
      %p51 = scmp.eq.s32.totalorder %s17, 3
      %p52 = por %p50, %p51
      %p54 = scmp.ne.s32.totalorder %s37, %s53
      %p55 = scmp.eq.s32.totalorder %s17, 0
      %p56 = por %p54, %p55
      %s57 = ssub.s32 %s18, %s30
      %s58 = ssub.s32 %s19, %s26
      %s59 = sor.u32 %s57, %s58
      %p60 = scmp.eq.s32.totalorder %s59, 0
      %s62 = sadd.s32 %s61, 1
      %s63 = scalar_select %p60, %s61, %s62
      %p66 = pneg %p60
      %p67 = scmp.eq.s32.totalorder %s11, 3
      %p68 = por %p66, %p67
      %p69 = scmp.ne.s32.totalorder %s61, %s64
      %p70 = scmp.eq.s32.totalorder %s11, 0
      %p71 = por %p69, %p70
      %p72 = scmp.ne.s32.totalorder %s61, %s64
      %p73 = scmp.eq.s32.totalorder %s16, 3
      %p74 = por %p72, %p73
      %p75 = scmp.ne.s32.totalorder %s64, %s65
      %p76 = scmp.eq.s32.totalorder %s16, 0
      %p77 = por %p75, %p76
      %p78 = scmp.ne.s32.totalorder %s64, %s65
      %p79 = scmp.eq.s32.totalorder %s17, 3
      %p80 = por %p78, %p79
      %p82 = scmp.ne.s32.totalorder %s65, %s81
      %p83 = scmp.eq.s32.totalorder %s17, 0
      %p84 = por %p82, %p83
      %s85 = ssub.s32 %s18, %s30
      %s86 = ssub.s32 %s19, %s26
      %s87 = sor.u32 %s85, %s86
      %p88 = scmp.eq.s32.totalorder %s87, 0
      %s90 = sadd.s32 %s89, 1
      %s91 = scalar_select %p88, %s89, %s90
      %p94 = pneg %p88
      %p95 = scmp.eq.s32.totalorder %s11, 3
      %p96 = por %p94, %p95
      %p97 = scmp.ne.s32.totalorder %s89, %s92
      %p98 = scmp.eq.s32.totalorder %s11, 0
      %p99 = por %p97, %p98
      %p100 = scmp.ne.s32.totalorder %s89, %s92
      %p101 = scmp.eq.s32.totalorder %s16, 3
      %p102 = por %p100, %p101
      %p103 = scmp.ne.s32.totalorder %s92, %s93
      %p104 = scmp.eq.s32.totalorder %s16, 0
      %p105 = por %p103, %p104
      %p106 = scmp.ne.s32.totalorder %s92, %s93
      %p107 = scmp.eq.s32.totalorder %s17, 3
      %p108 = por %p106, %p107
      %p110 = scmp.ne.s32.totalorder %s93, %s109
      %p111 = scmp.eq.s32.totalorder %s17, 0
      %p112 = por %p110, %p111
      %p113 = scmp.le.s32.totalorder 1, %s11
      %p114 = scmp.lt.s32.totalorder %s11, 5
      %p115 = pnand %p113, %p114
      %p116 = pneg %p115
      // Predicated region
      $region9: #{tpu_custom_call.1} parent=5 // pred_check
        _
      $region10: #{tpu_custom_call.1} parent=5 // pred_check_branch
        %118 = sbr.rel (%p115) target = $region12
      $region11: #{tpu_custom_call.1} parent=5 // pred_region
        %s119 = ssub.s32 %s11, 1
      $region12: #{tpu_custom_call.1} parent=5 // pred_fallthru
        _
      %p120 = scmp.lt.s32.totalorder %s11, 4
      // Predicated region
      $region13: #{tpu_custom_call.1} parent=5 // pred_check
        %p121 = pneg %p120
      $region14: #{tpu_custom_call.1} parent=5 // pred_check_branch
        %123 = sbr.rel (%p121) target = $region16
      $region15: #{tpu_custom_call.1} parent=5 // pred_region
        // Predicated region
        $region17: #{tpu_custom_call.1} parent=15 // pred_check
          %p124 = pneg %p43
        $region18: #{tpu_custom_call.1} parent=15 // pred_check_branch
          %126 = sbr.rel (%p124) target = $region20
        $region19: #{tpu_custom_call.1} parent=15 // pred_region
          %p127 = scmp.lt.s32.totalorder %s18, 1
          %s128 = scalar_select %p127, %s18, 1
          %s129 = smul.addr %s128, 32
          %s130 = smul.addr %s129, 8
          %s131 = scalar_lea.vmem %s0, %s130
        $region20: #{tpu_custom_call.1} parent=15 // pred_fallthru
          _
        // Predicated region
        $region21: #{tpu_custom_call.1} parent=15 // pred_check
          %p132 = pneg %p71
        $region22: #{tpu_custom_call.1} parent=15 // pred_check_branch
          %134 = sbr.rel (%p132) target = $region24
        $region23: #{tpu_custom_call.1} parent=15 // pred_region
          %s135 = smul.u32 16, %s19
          %p136 = scmp.lt.s32.totalorder %s18, 1
          %s137 = scalar_select %p136, %s18, 1
          %p138 = scmp.lt.s32.totalorder %s135, 31
          %s139 = scalar_select %p138, %s135, 31
          %s140 = smul.addr %s137, 32
          %s141 = sadd.s32 %s139, %s140
          %s142 = smul.addr %s141, 8
          %s143 = scalar_lea.vmem %s1, %s142
          %s144 = smul.u32 16, %s19
        $region24: #{tpu_custom_call.1} parent=15 // pred_fallthru
          _
      $region16: #{tpu_custom_call.1} parent=5 // pred_fallthru
        _
      %p145 = scmp.le.s32.totalorder 1, %s11
      %p146 = scmp.lt.s32.totalorder %s11, 5
      %p147 = pnand %p145, %p146
      %p148 = pneg %p147
      // Predicated region
      $region25: #{tpu_custom_call.1} parent=5 // pred_check
        _
      $region26: #{tpu_custom_call.1} parent=5 // pred_check_branch
        %150 = sbr.rel (%p147) target = $region28
      $region27: #{tpu_custom_call.1} parent=5 // pred_region
        %s151 = ssub.s32 %s11, 1
        %p152 = scmp.lt.s32.totalorder %s20, 1
        %s153 = scalar_select %p152, %s20, 1
        %s154 = smul.addr %s153, 32
        %s155 = smul.addr %s154, 8
        %s156 = scalar_lea.vmem %s0, %s155
        %p157 = pneg %p49
        %p158 = pneg %p46
        %s159 = smul.u32 16, %s21
        %p160 = scmp.lt.s32.totalorder %s20, 1
        %s161 = scalar_select %p160, %s20, 1
        %p162 = scmp.lt.s32.totalorder %s159, 31
        %s163 = scalar_select %p162, %s159, 31
        %s164 = smul.addr %s161, 32
        %s165 = sadd.s32 %s163, %s164
        %s166 = smul.addr %s165, 8
        %s167 = scalar_lea.vmem %s1, %s166
        %p168 = pneg %p77
        %p169 = pneg %p74
        %p170 = pneg %p105
        %p171 = pneg %p102
        %s172 = sand.u32 %s92, 1
        %s173 = scalar_lea.sflag [#allocation3], %s172
        %s174 = sand.u32 %s92, 1
        %s175 = smul.addr %s174, 128
        %s176 = scalar_lea.vmem [#allocation2], %s175
        %p177 = scmp.lt.s32.totalorder %s20, 1
        %s178 = scalar_select %p177, %s20, 1
        %s179 = smul.addr %s178, 32
        %s180 = smul.addr %s179, 8
        %s181 = scalar_lea.vmem %s0, %s180
        %s182 = smul.u32 16, %s21
        %p183 = scmp.lt.s32.totalorder %s20, 1
        %s184 = scalar_select %p183, %s20, 1
        %p185 = scmp.lt.s32.totalorder %s182, 31
        %s186 = scalar_select %p185, %s182, 31
        %s187 = smul.addr %s184, 32
        %s188 = sadd.s32 %s186, %s187
        %s189 = smul.addr %s188, 8
        %s190 = scalar_lea.vmem %s1, %s189
        %s191 = smul.u32 16, %s21
        %s192 = smul.u32 16, %s21
        %v193 = vld [vmem:[%s181] sm:$0xff]
        %v194 = vld [vmem:[%s181 + $0x8] sm:$0xff]
        %v195 = vld [vmem:[%s181 + $0x10] sm:$0xff]
        %v196 = vld [vmem:[%s181 + $0x18] sm:$0xff]
        %v197 = vld [vmem:[%s181 + $0x20] sm:$0xff]
        %v198 = vld [vmem:[%s181 + $0x28] sm:$0xff]
        %v199 = vld [vmem:[%s181 + $0x30] sm:$0xff]
        %v200 = vld [vmem:[%s181 + $0x38] sm:$0xff]
        %v201 = vld [vmem:[%s181 + $0x40] sm:$0xff]
        %v202 = vld [vmem:[%s181 + $0x48] sm:$0xff]
        %v203 = vld [vmem:[%s181 + $0x50] sm:$0xff]
        %v204 = vld [vmem:[%s181 + $0x58] sm:$0xff]
        %v205 = vld [vmem:[%s181 + $0x60] sm:$0xff]
        %v206 = vld [vmem:[%s181 + $0x68] sm:$0xff]
        %v207 = vld [vmem:[%s181 + $0x70] sm:$0xff]
        %v208 = vld [vmem:[%s181 + $0x78] sm:$0xff]
        %v209 = vld [vmem:[%s181 + $0x80] sm:$0xff]
        %v210 = vld [vmem:[%s181 + $0x88] sm:$0xff]
        %v211 = vld [vmem:[%s181 + $0x90] sm:$0xff]
        %v212 = vld [vmem:[%s181 + $0x98] sm:$0xff]
        %v213 = vld [vmem:[%s181 + $0xa0] sm:$0xff]
        %v214 = vld [vmem:[%s181 + $0xa8] sm:$0xff]
        %v215 = vld [vmem:[%s181 + $0xb0] sm:$0xff]
        %v216 = vld [vmem:[%s181 + $0xb8] sm:$0xff]
        %v217 = vld [vmem:[%s181 + $0xc0] sm:$0xff]
        %v218 = vld [vmem:[%s181 + $0xc8] sm:$0xff]
        %v219 = vld [vmem:[%s181 + $0xd0] sm:$0xff]
        %v220 = vld [vmem:[%s181 + $0xd8] sm:$0xff]
        %v221 = vld [vmem:[%s181 + $0xe0] sm:$0xff]
        %v222 = vld [vmem:[%s181 + $0xe8] sm:$0xff]
        %v223 = vld [vmem:[%s181 + $0xf0] sm:$0xff]
        %v224 = vld [vmem:[%s181 + $0xf8] sm:$0xff]
        %v225 = vld [vmem:[%s190] sm:$0xff]
        %v226 = vld [vmem:[%s190 + $0x8] sm:$0xff]
        %v227 = vld [vmem:[%s190 + $0x10] sm:$0xff]
        %v228 = vld [vmem:[%s190 + $0x18] sm:$0xff]
        %v229 = vld [vmem:[%s190 + $0x20] sm:$0xff]
        %v230 = vld [vmem:[%s190 + $0x28] sm:$0xff]
        %v231 = vld [vmem:[%s190 + $0x30] sm:$0xff]
        %v232 = vld [vmem:[%s190 + $0x38] sm:$0xff]
        %v233 = vld [vmem:[%s190 + $0x40] sm:$0xff]
        %v234 = vld [vmem:[%s190 + $0x48] sm:$0xff]
        %v235 = vld [vmem:[%s190 + $0x50] sm:$0xff]
        %v236 = vld [vmem:[%s190 + $0x58] sm:$0xff]
        %v237 = vld [vmem:[%s190 + $0x60] sm:$0xff]
        %v238 = vld [vmem:[%s190 + $0x68] sm:$0xff]
        %v239 = vld [vmem:[%s190 + $0x70] sm:$0xff]
        %v240 = vld [vmem:[%s190 + $0x78] sm:$0xff]
        %v241 = vlaneseq
        %v242 = vand.u32 %v241, 127
        %v243 = vadd.s32 %v242, 128
        %244 = vrot.lane.b32.xlu0 %v225, 127
        %v245 = vpop.permute.xlu0 %244
        %246 = vrot.lane.b32.xlu0 %v226, 127
        %v247 = vpop.permute.xlu0 %246
        %248 = vrot.lane.b32.xlu0 %v227, 127
        %v249 = vpop.permute.xlu0 %248
        %250 = vrot.lane.b32.xlu0 %v228, 127
        %v251 = vpop.permute.xlu0 %250
        %252 = vrot.lane.b32.xlu0 %v229, 127
        %v253 = vpop.permute.xlu0 %252
        %254 = vrot.lane.b32.xlu0 %v230, 127
        %v255 = vpop.permute.xlu0 %254
        %256 = vrot.lane.b32.xlu0 %v231, 127
        %v257 = vpop.permute.xlu0 %256
        %258 = vrot.lane.b32.xlu0 %v232, 127
        %v259 = vpop.permute.xlu0 %258
        %260 = vrot.lane.b32.xlu0 %v233, 127
        %v261 = vpop.permute.xlu0 %260
        %262 = vrot.lane.b32.xlu0 %v234, 127
        %v263 = vpop.permute.xlu0 %262
        %264 = vrot.lane.b32.xlu0 %v235, 127
        %v265 = vpop.permute.xlu0 %264
        %266 = vrot.lane.b32.xlu0 %v236, 127
        %v267 = vpop.permute.xlu0 %266
        %268 = vrot.lane.b32.xlu0 %v237, 127
        %v269 = vpop.permute.xlu0 %268
        %270 = vrot.lane.b32.xlu0 %v238, 127
        %v271 = vpop.permute.xlu0 %270
        %272 = vrot.lane.b32.xlu0 %v239, 127
        %v273 = vpop.permute.xlu0 %272
        %274 = vrot.lane.b32.xlu0 %v240, 127
        %v275 = vpop.permute.xlu0 %274
        %276 = vrot.lane.b32.xlu0 %v225, 126
        %v277 = vpop.permute.xlu0 %276
        %278 = vrot.lane.b32.xlu0 %v226, 126
        %v279 = vpop.permute.xlu0 %278
        %280 = vrot.lane.b32.xlu0 %v227, 126
        %v281 = vpop.permute.xlu0 %280
        %282 = vrot.lane.b32.xlu0 %v228, 126
        %v283 = vpop.permute.xlu0 %282
        %284 = vrot.lane.b32.xlu0 %v229, 126
        %v285 = vpop.permute.xlu0 %284
        %286 = vrot.lane.b32.xlu0 %v230, 126
        %v287 = vpop.permute.xlu0 %286
        %288 = vrot.lane.b32.xlu0 %v231, 126
        %v289 = vpop.permute.xlu0 %288
        %290 = vrot.lane.b32.xlu0 %v232, 126
        %v291 = vpop.permute.xlu0 %290
        %292 = vrot.lane.b32.xlu0 %v233, 126
        %v293 = vpop.permute.xlu0 %292
        %294 = vrot.lane.b32.xlu0 %v234, 126
        %v295 = vpop.permute.xlu0 %294
        %296 = vrot.lane.b32.xlu0 %v235, 126
        %v297 = vpop.permute.xlu0 %296
        %298 = vrot.lane.b32.xlu0 %v236, 126
        %v299 = vpop.permute.xlu0 %298
        %300 = vrot.lane.b32.xlu0 %v237, 126
        %v301 = vpop.permute.xlu0 %300
        %302 = vrot.lane.b32.xlu0 %v238, 126
        %v303 = vpop.permute.xlu0 %302
        %304 = vrot.lane.b32.xlu0 %v239, 126
        %v305 = vpop.permute.xlu0 %304
        %306 = vrot.lane.b32.xlu0 %v240, 126
        %v307 = vpop.permute.xlu0 %306
        %308 = vrot.lane.b32.xlu0 %v225, 125
        %v309 = vpop.permute.xlu0 %308
        %310 = vrot.lane.b32.xlu0 %v226, 125
        %v311 = vpop.permute.xlu0 %310
        %312 = vrot.lane.b32.xlu0 %v227, 125
        %v313 = vpop.permute.xlu0 %312
        %314 = vrot.lane.b32.xlu0 %v228, 125
        %v315 = vpop.permute.xlu0 %314
        %316 = vrot.lane.b32.xlu0 %v229, 125
        %v317 = vpop.permute.xlu0 %316
        %318 = vrot.lane.b32.xlu0 %v230, 125
        %v319 = vpop.permute.xlu0 %318
        %320 = vrot.lane.b32.xlu0 %v231, 125
        %v321 = vpop.permute.xlu0 %320
        %322 = vrot.lane.b32.xlu0 %v232, 125
        %v323 = vpop.permute.xlu0 %322
        %324 = vrot.lane.b32.xlu0 %v233, 125
        %v325 = vpop.permute.xlu0 %324
        %326 = vrot.lane.b32.xlu0 %v234, 125
        %v327 = vpop.permute.xlu0 %326
        %328 = vrot.lane.b32.xlu0 %v235, 125
        %v329 = vpop.permute.xlu0 %328
        %330 = vrot.lane.b32.xlu0 %v236, 125
        %v331 = vpop.permute.xlu0 %330
        %332 = vrot.lane.b32.xlu0 %v237, 125
        %v333 = vpop.permute.xlu0 %332
        %334 = vrot.lane.b32.xlu0 %v238, 125
        %v335 = vpop.permute.xlu0 %334
        %336 = vrot.lane.b32.xlu0 %v239, 125
        %v337 = vpop.permute.xlu0 %336
        %338 = vrot.lane.b32.xlu0 %v240, 125
        %v339 = vpop.permute.xlu0 %338
        %340 = vset.pattern.permute.xlu0 0
        %341 = vperm.xlu0 %340, %v225
        %v342 = vpop.permute.xlu0 %341
        %343 = vset.pattern.permute.xlu0 0
        %344 = vperm.xlu0 %343, %v226
        %v345 = vpop.permute.xlu0 %344
        %346 = vset.pattern.permute.xlu0 0
        %347 = vperm.xlu0 %346, %v227
        %v348 = vpop.permute.xlu0 %347
        %349 = vset.pattern.permute.xlu0 0
        %350 = vperm.xlu0 %349, %v228
        %v351 = vpop.permute.xlu0 %350
        %352 = vset.pattern.permute.xlu0 0
        %353 = vperm.xlu0 %352, %v229
        %v354 = vpop.permute.xlu0 %353
        %355 = vset.pattern.permute.xlu0 0
        %356 = vperm.xlu0 %355, %v230
        %v357 = vpop.permute.xlu0 %356
        %358 = vset.pattern.permute.xlu0 0
        %359 = vperm.xlu0 %358, %v231
        %v360 = vpop.permute.xlu0 %359
        %361 = vset.pattern.permute.xlu0 0
        %362 = vperm.xlu0 %361, %v232
        %v363 = vpop.permute.xlu0 %362
        %364 = vset.pattern.permute.xlu0 0
        %365 = vperm.xlu0 %364, %v233
        %v366 = vpop.permute.xlu0 %365
        %367 = vset.pattern.permute.xlu0 0
        %368 = vperm.xlu0 %367, %v234
        %v369 = vpop.permute.xlu0 %368
        %370 = vset.pattern.permute.xlu0 0
        %371 = vperm.xlu0 %370, %v235
        %v372 = vpop.permute.xlu0 %371
        %373 = vset.pattern.permute.xlu0 0
        %374 = vperm.xlu0 %373, %v236
        %v375 = vpop.permute.xlu0 %374
        %376 = vset.pattern.permute.xlu0 0
        %377 = vperm.xlu0 %376, %v237
        %v378 = vpop.permute.xlu0 %377
        %379 = vset.pattern.permute.xlu0 0
        %380 = vperm.xlu0 %379, %v238
        %v381 = vpop.permute.xlu0 %380
        %382 = vset.pattern.permute.xlu0 0
        %383 = vperm.xlu0 %382, %v239
        %v384 = vpop.permute.xlu0 %383
        %385 = vset.pattern.permute.xlu0 0
        %386 = vperm.xlu0 %385, %v240
        %v387 = vpop.permute.xlu0 %386
        %388 = vset.pattern.permute.xlu0 0
        %389 = vperm.xlu0 %388, %v245
        %v390 = vpop.permute.xlu0 %389
        %391 = vset.pattern.permute.xlu0 0
        %392 = vperm.xlu0 %391, %v247
        %v393 = vpop.permute.xlu0 %392
        %394 = vset.pattern.permute.xlu0 0
        %395 = vperm.xlu0 %394, %v249
        %v396 = vpop.permute.xlu0 %395
        %397 = vset.pattern.permute.xlu0 0
        %398 = vperm.xlu0 %397, %v251
        %v399 = vpop.permute.xlu0 %398
        %400 = vset.pattern.permute.xlu0 0
        %401 = vperm.xlu0 %400, %v253
        %v402 = vpop.permute.xlu0 %401
        %403 = vset.pattern.permute.xlu0 0
        %404 = vperm.xlu0 %403, %v255
        %v405 = vpop.permute.xlu0 %404
        %406 = vset.pattern.permute.xlu0 0
        %407 = vperm.xlu0 %406, %v257
        %v408 = vpop.permute.xlu0 %407
        %409 = vset.pattern.permute.xlu0 0
        %410 = vperm.xlu0 %409, %v259
        %v411 = vpop.permute.xlu0 %410
        %412 = vset.pattern.permute.xlu0 0
        %413 = vperm.xlu0 %412, %v261
        %v414 = vpop.permute.xlu0 %413
        %415 = vset.pattern.permute.xlu0 0
        %416 = vperm.xlu0 %415, %v263
        %v417 = vpop.permute.xlu0 %416
        %418 = vset.pattern.permute.xlu0 0
        %419 = vperm.xlu0 %418, %v265
        %v420 = vpop.permute.xlu0 %419
        %421 = vset.pattern.permute.xlu0 0
        %422 = vperm.xlu0 %421, %v267
        %v423 = vpop.permute.xlu0 %422
        %424 = vset.pattern.permute.xlu0 0
        %425 = vperm.xlu0 %424, %v269
        %v426 = vpop.permute.xlu0 %425
        %427 = vset.pattern.permute.xlu0 0
        %428 = vperm.xlu0 %427, %v271
        %v429 = vpop.permute.xlu0 %428
        %430 = vset.pattern.permute.xlu0 0
        %431 = vperm.xlu0 %430, %v273
        %v432 = vpop.permute.xlu0 %431
        %433 = vset.pattern.permute.xlu0 0
        %434 = vperm.xlu0 %433, %v275
        %v435 = vpop.permute.xlu0 %434
        %436 = vset.pattern.permute.xlu0 0
        %437 = vperm.xlu0 %436, %v277
        %v438 = vpop.permute.xlu0 %437
        %439 = vset.pattern.permute.xlu0 0
        %440 = vperm.xlu0 %439, %v279
        %v441 = vpop.permute.xlu0 %440
        %442 = vset.pattern.permute.xlu0 0
        %443 = vperm.xlu0 %442, %v281
        %v444 = vpop.permute.xlu0 %443
        %445 = vset.pattern.permute.xlu0 0
        %446 = vperm.xlu0 %445, %v283
        %v447 = vpop.permute.xlu0 %446
        %448 = vset.pattern.permute.xlu0 0
        %449 = vperm.xlu0 %448, %v285
        %v450 = vpop.permute.xlu0 %449
        %451 = vset.pattern.permute.xlu0 0
        %452 = vperm.xlu0 %451, %v287
        %v453 = vpop.permute.xlu0 %452
        %454 = vset.pattern.permute.xlu0 0
        %455 = vperm.xlu0 %454, %v289
        %v456 = vpop.permute.xlu0 %455
        %457 = vset.pattern.permute.xlu0 0
        %458 = vperm.xlu0 %457, %v291
        %v459 = vpop.permute.xlu0 %458
        %460 = vset.pattern.permute.xlu0 0
        %461 = vperm.xlu0 %460, %v293
        %v462 = vpop.permute.xlu0 %461
        %463 = vset.pattern.permute.xlu0 0
        %464 = vperm.xlu0 %463, %v295
        %v465 = vpop.permute.xlu0 %464
        %466 = vset.pattern.permute.xlu0 0
        %467 = vperm.xlu0 %466, %v297
        %v468 = vpop.permute.xlu0 %467
        %469 = vset.pattern.permute.xlu0 0
        %470 = vperm.xlu0 %469, %v299
        %v471 = vpop.permute.xlu0 %470
        %472 = vset.pattern.permute.xlu0 0
        %473 = vperm.xlu0 %472, %v301
        %v474 = vpop.permute.xlu0 %473
        %475 = vset.pattern.permute.xlu0 0
        %476 = vperm.xlu0 %475, %v303
        %v477 = vpop.permute.xlu0 %476
        %478 = vset.pattern.permute.xlu0 0
        %479 = vperm.xlu0 %478, %v305
        %v480 = vpop.permute.xlu0 %479
        %481 = vset.pattern.permute.xlu0 0
        %482 = vperm.xlu0 %481, %v307
        %v483 = vpop.permute.xlu0 %482
        %484 = vset.pattern.permute.xlu0 0
        %485 = vperm.xlu0 %484, %v309
        %v486 = vpop.permute.xlu0 %485
        %487 = vset.pattern.permute.xlu0 0
        %488 = vperm.xlu0 %487, %v311
        %v489 = vpop.permute.xlu0 %488
        %490 = vset.pattern.permute.xlu0 0
        %491 = vperm.xlu0 %490, %v313
        %v492 = vpop.permute.xlu0 %491
        %493 = vset.pattern.permute.xlu0 0
        %494 = vperm.xlu0 %493, %v315
        %v495 = vpop.permute.xlu0 %494
        %496 = vset.pattern.permute.xlu0 0
        %497 = vperm.xlu0 %496, %v317
        %v498 = vpop.permute.xlu0 %497
        %499 = vset.pattern.permute.xlu0 0
        %500 = vperm.xlu0 %499, %v319
        %v501 = vpop.permute.xlu0 %500
        %502 = vset.pattern.permute.xlu0 0
        %503 = vperm.xlu0 %502, %v321
        %v504 = vpop.permute.xlu0 %503
        %505 = vset.pattern.permute.xlu0 0
        %506 = vperm.xlu0 %505, %v323
        %v507 = vpop.permute.xlu0 %506
        %508 = vset.pattern.permute.xlu0 0
        %509 = vperm.xlu0 %508, %v325
        %v510 = vpop.permute.xlu0 %509
        %511 = vset.pattern.permute.xlu0 0
        %512 = vperm.xlu0 %511, %v327
        %v513 = vpop.permute.xlu0 %512
        %514 = vset.pattern.permute.xlu0 0
        %515 = vperm.xlu0 %514, %v329
        %v516 = vpop.permute.xlu0 %515
        %517 = vset.pattern.permute.xlu0 0
        %518 = vperm.xlu0 %517, %v331
        %v519 = vpop.permute.xlu0 %518
        %520 = vset.pattern.permute.xlu0 0
        %521 = vperm.xlu0 %520, %v333
        %v522 = vpop.permute.xlu0 %521
        %523 = vset.pattern.permute.xlu0 0
        %524 = vperm.xlu0 %523, %v335
        %v525 = vpop.permute.xlu0 %524
        %526 = vset.pattern.permute.xlu0 0
        %527 = vperm.xlu0 %526, %v337
        %v528 = vpop.permute.xlu0 %527
        %529 = vset.pattern.permute.xlu0 0
        %530 = vperm.xlu0 %529, %v339
        %v531 = vpop.permute.xlu0 %530
        %vm532 = vcmp.eq.s32.totalorder %v342, %v242
        %vm533 = vcmp.eq.s32.totalorder %v342, %v243
        %vm534 = vcmp.eq.s32.totalorder %v345, %v242
        %vm535 = vcmp.eq.s32.totalorder %v345, %v243
        %vm536 = vcmp.eq.s32.totalorder %v348, %v242
        %vm537 = vcmp.eq.s32.totalorder %v348, %v243
        %vm538 = vcmp.eq.s32.totalorder %v351, %v242
        %vm539 = vcmp.eq.s32.totalorder %v351, %v243
        %vm540 = vcmp.eq.s32.totalorder %v354, %v242
        %vm541 = vcmp.eq.s32.totalorder %v354, %v243
        %vm542 = vcmp.eq.s32.totalorder %v357, %v242
        %vm543 = vcmp.eq.s32.totalorder %v357, %v243
        %vm544 = vcmp.eq.s32.totalorder %v360, %v242
        %vm545 = vcmp.eq.s32.totalorder %v360, %v243
        %vm546 = vcmp.eq.s32.totalorder %v363, %v242
        %vm547 = vcmp.eq.s32.totalorder %v363, %v243
        %vm548 = vcmp.eq.s32.totalorder %v366, %v242
        %vm549 = vcmp.eq.s32.totalorder %v366, %v243
        %vm550 = vcmp.eq.s32.totalorder %v369, %v242
        %vm551 = vcmp.eq.s32.totalorder %v369, %v243
        %vm552 = vcmp.eq.s32.totalorder %v372, %v242
        %vm553 = vcmp.eq.s32.totalorder %v372, %v243
        %vm554 = vcmp.eq.s32.totalorder %v375, %v242
        %vm555 = vcmp.eq.s32.totalorder %v375, %v243
        %vm556 = vcmp.eq.s32.totalorder %v378, %v242
        %vm557 = vcmp.eq.s32.totalorder %v378, %v243
        %vm558 = vcmp.eq.s32.totalorder %v381, %v242
        %vm559 = vcmp.eq.s32.totalorder %v381, %v243
        %vm560 = vcmp.eq.s32.totalorder %v384, %v242
        %vm561 = vcmp.eq.s32.totalorder %v384, %v243
        %vm562 = vcmp.eq.s32.totalorder %v387, %v242
        %vm563 = vcmp.eq.s32.totalorder %v387, %v243
        %vm564 = vcmp.eq.s32.totalorder %v390, %v242
        %vm565 = vcmp.eq.s32.totalorder %v390, %v243
        %vm566 = vcmp.eq.s32.totalorder %v393, %v242
        %vm567 = vcmp.eq.s32.totalorder %v393, %v243
        %vm568 = vcmp.eq.s32.totalorder %v396, %v242
        %vm569 = vcmp.eq.s32.totalorder %v396, %v243
        %vm570 = vcmp.eq.s32.totalorder %v399, %v242
        %vm571 = vcmp.eq.s32.totalorder %v399, %v243
        %vm572 = vcmp.eq.s32.totalorder %v402, %v242
        %vm573 = vcmp.eq.s32.totalorder %v402, %v243
        %vm574 = vcmp.eq.s32.totalorder %v405, %v242
        %vm575 = vcmp.eq.s32.totalorder %v405, %v243
        %vm576 = vcmp.eq.s32.totalorder %v408, %v242
        %vm577 = vcmp.eq.s32.totalorder %v408, %v243
        %vm578 = vcmp.eq.s32.totalorder %v411, %v242
        %vm579 = vcmp.eq.s32.totalorder %v411, %v243
        %vm580 = vcmp.eq.s32.totalorder %v414, %v242
        %vm581 = vcmp.eq.s32.totalorder %v414, %v243
        %vm582 = vcmp.eq.s32.totalorder %v417, %v242
        %vm583 = vcmp.eq.s32.totalorder %v417, %v243
        %vm584 = vcmp.eq.s32.totalorder %v420, %v242
        %vm585 = vcmp.eq.s32.totalorder %v420, %v243
        %vm586 = vcmp.eq.s32.totalorder %v423, %v242
        %vm587 = vcmp.eq.s32.totalorder %v423, %v243
        %vm588 = vcmp.eq.s32.totalorder %v426, %v242
        %vm589 = vcmp.eq.s32.totalorder %v426, %v243
        %vm590 = vcmp.eq.s32.totalorder %v429, %v242
        %vm591 = vcmp.eq.s32.totalorder %v429, %v243
        %vm592 = vcmp.eq.s32.totalorder %v432, %v242
        %vm593 = vcmp.eq.s32.totalorder %v432, %v243
        %vm594 = vcmp.eq.s32.totalorder %v435, %v242
        %vm595 = vcmp.eq.s32.totalorder %v435, %v243
        %vm596 = vcmp.eq.s32.totalorder %v438, %v242
        %vm597 = vcmp.eq.s32.totalorder %v438, %v243
        %vm598 = vcmp.eq.s32.totalorder %v441, %v242
        %vm599 = vcmp.eq.s32.totalorder %v441, %v243
        %vm600 = vcmp.eq.s32.totalorder %v444, %v242
        %vm601 = vcmp.eq.s32.totalorder %v444, %v243
        %vm602 = vcmp.eq.s32.totalorder %v447, %v242
        %vm603 = vcmp.eq.s32.totalorder %v447, %v243
        %vm604 = vcmp.eq.s32.totalorder %v450, %v242
        %vm605 = vcmp.eq.s32.totalorder %v450, %v243
        %vm606 = vcmp.eq.s32.totalorder %v453, %v242
        %vm607 = vcmp.eq.s32.totalorder %v453, %v243
        %vm608 = vcmp.eq.s32.totalorder %v456, %v242
        %vm609 = vcmp.eq.s32.totalorder %v456, %v243
        %vm610 = vcmp.eq.s32.totalorder %v459, %v242
        %vm611 = vcmp.eq.s32.totalorder %v459, %v243
        %vm612 = vcmp.eq.s32.totalorder %v462, %v242
        %vm613 = vcmp.eq.s32.totalorder %v462, %v243
        %vm614 = vcmp.eq.s32.totalorder %v465, %v242
        %vm615 = vcmp.eq.s32.totalorder %v465, %v243
        %vm616 = vcmp.eq.s32.totalorder %v468, %v242
        %vm617 = vcmp.eq.s32.totalorder %v468, %v243
        %vm618 = vcmp.eq.s32.totalorder %v471, %v242
        %vm619 = vcmp.eq.s32.totalorder %v471, %v243
        %vm620 = vcmp.eq.s32.totalorder %v474, %v242
        %vm621 = vcmp.eq.s32.totalorder %v474, %v243
        %vm622 = vcmp.eq.s32.totalorder %v477, %v242
        %vm623 = vcmp.eq.s32.totalorder %v477, %v243
        %vm624 = vcmp.eq.s32.totalorder %v480, %v242
        %vm625 = vcmp.eq.s32.totalorder %v480, %v243
        %vm626 = vcmp.eq.s32.totalorder %v483, %v242
        %vm627 = vcmp.eq.s32.totalorder %v483, %v243
        %vm628 = vcmp.eq.s32.totalorder %v486, %v242
        %vm629 = vcmp.eq.s32.totalorder %v486, %v243
        %vm630 = vcmp.eq.s32.totalorder %v489, %v242
        %vm631 = vcmp.eq.s32.totalorder %v489, %v243
        %vm632 = vcmp.eq.s32.totalorder %v492, %v242
        %vm633 = vcmp.eq.s32.totalorder %v492, %v243
        %vm634 = vcmp.eq.s32.totalorder %v495, %v242
        %vm635 = vcmp.eq.s32.totalorder %v495, %v243
        %vm636 = vcmp.eq.s32.totalorder %v498, %v242
        %vm637 = vcmp.eq.s32.totalorder %v498, %v243
        %vm638 = vcmp.eq.s32.totalorder %v501, %v242
        %vm639 = vcmp.eq.s32.totalorder %v501, %v243
        %vm640 = vcmp.eq.s32.totalorder %v504, %v242
        %vm641 = vcmp.eq.s32.totalorder %v504, %v243
        %vm642 = vcmp.eq.s32.totalorder %v507, %v242
        %vm643 = vcmp.eq.s32.totalorder %v507, %v243
        %vm644 = vcmp.eq.s32.totalorder %v510, %v242
        %vm645 = vcmp.eq.s32.totalorder %v510, %v243
        %vm646 = vcmp.eq.s32.totalorder %v513, %v242
        %vm647 = vcmp.eq.s32.totalorder %v513, %v243
        %vm648 = vcmp.eq.s32.totalorder %v516, %v242
        %vm649 = vcmp.eq.s32.totalorder %v516, %v243
        %vm650 = vcmp.eq.s32.totalorder %v519, %v242
        %vm651 = vcmp.eq.s32.totalorder %v519, %v243
        %vm652 = vcmp.eq.s32.totalorder %v522, %v242
        %vm653 = vcmp.eq.s32.totalorder %v522, %v243
        %vm654 = vcmp.eq.s32.totalorder %v525, %v242
        %vm655 = vcmp.eq.s32.totalorder %v525, %v243
        %vm656 = vcmp.eq.s32.totalorder %v528, %v242
        %vm657 = vcmp.eq.s32.totalorder %v528, %v243
        %vm658 = vcmp.eq.s32.totalorder %v531, %v242
        %vm659 = vcmp.eq.s32.totalorder %v531, %v243
        %v660 = vsel %vm532, 1, 0
        %v661 = vsel %vm533, 1, 0
        %v662 = vsel %vm534, 1, 0
        %v663 = vsel %vm535, 1, 0
        %v664 = vsel %vm536, 1, 0
        %v665 = vsel %vm537, 1, 0
        %v666 = vsel %vm538, 1, 0
        %v667 = vsel %vm539, 1, 0
        %v668 = vsel %vm540, 1, 0
        %v669 = vsel %vm541, 1, 0
        %v670 = vsel %vm542, 1, 0
        %v671 = vsel %vm543, 1, 0
        %v672 = vsel %vm544, 1, 0
        %v673 = vsel %vm545, 1, 0
        %v674 = vsel %vm546, 1, 0
        %v675 = vsel %vm547, 1, 0
        %v676 = vsel %vm548, 1, 0
        %v677 = vsel %vm549, 1, 0
        %v678 = vsel %vm550, 1, 0
        %v679 = vsel %vm551, 1, 0
        %v680 = vsel %vm552, 1, 0
        %v681 = vsel %vm553, 1, 0
        %v682 = vsel %vm554, 1, 0
        %v683 = vsel %vm555, 1, 0
        %v684 = vsel %vm556, 1, 0
        %v685 = vsel %vm557, 1, 0
        %v686 = vsel %vm558, 1, 0
        %v687 = vsel %vm559, 1, 0
        %v688 = vsel %vm560, 1, 0
        %v689 = vsel %vm561, 1, 0
        %v690 = vsel %vm562, 1, 0
        %v691 = vsel %vm563, 1, 0
        %v692 = vsel %vm564, 1, 0
        %v693 = vsel %vm565, 1, 0
        %v694 = vsel %vm566, 1, 0
        %v695 = vsel %vm567, 1, 0
        %v696 = vsel %vm568, 1, 0
        %v697 = vsel %vm569, 1, 0
        %v698 = vsel %vm570, 1, 0
        %v699 = vsel %vm571, 1, 0
        %v700 = vsel %vm572, 1, 0
        %v701 = vsel %vm573, 1, 0
        %v702 = vsel %vm574, 1, 0
        %v703 = vsel %vm575, 1, 0
        %v704 = vsel %vm576, 1, 0
        %v705 = vsel %vm577, 1, 0
        %v706 = vsel %vm578, 1, 0
        %v707 = vsel %vm579, 1, 0
        %v708 = vsel %vm580, 1, 0
        %v709 = vsel %vm581, 1, 0
        %v710 = vsel %vm582, 1, 0
        %v711 = vsel %vm583, 1, 0
        %v712 = vsel %vm584, 1, 0
        %v713 = vsel %vm585, 1, 0
        %v714 = vsel %vm586, 1, 0
        %v715 = vsel %vm587, 1, 0
        %v716 = vsel %vm588, 1, 0
        %v717 = vsel %vm589, 1, 0
        %v718 = vsel %vm590, 1, 0
        %v719 = vsel %vm591, 1, 0
        %v720 = vsel %vm592, 1, 0
        %v721 = vsel %vm593, 1, 0
        %v722 = vsel %vm594, 1, 0
        %v723 = vsel %vm595, 1, 0
        %v724 = vsel %vm596, 1, 0
        %v725 = vsel %vm597, 1, 0
        %v726 = vsel %vm598, 1, 0
        %v727 = vsel %vm599, 1, 0
        %v728 = vsel %vm600, 1, 0
        %v729 = vsel %vm601, 1, 0
        %v730 = vsel %vm602, 1, 0
        %v731 = vsel %vm603, 1, 0
        %v732 = vsel %vm604, 1, 0
        %v733 = vsel %vm605, 1, 0
        %v734 = vsel %vm606, 1, 0
        %v735 = vsel %vm607, 1, 0
        %v736 = vsel %vm608, 1, 0
        %v737 = vsel %vm609, 1, 0
        %v738 = vsel %vm610, 1, 0
        %v739 = vsel %vm611, 1, 0
        %v740 = vsel %vm612, 1, 0
        %v741 = vsel %vm613, 1, 0
        %v742 = vsel %vm614, 1, 0
        %v743 = vsel %vm615, 1, 0
        %v744 = vsel %vm616, 1, 0
        %v745 = vsel %vm617, 1, 0
        %v746 = vsel %vm618, 1, 0
        %v747 = vsel %vm619, 1, 0
        %v748 = vsel %vm620, 1, 0
        %v749 = vsel %vm621, 1, 0
        %v750 = vsel %vm622, 1, 0
        %v751 = vsel %vm623, 1, 0
        %v752 = vsel %vm624, 1, 0
        %v753 = vsel %vm625, 1, 0
        %v754 = vsel %vm626, 1, 0
        %v755 = vsel %vm627, 1, 0
        %v756 = vsel %vm628, 1, 0
        %v757 = vsel %vm629, 1, 0
        %v758 = vsel %vm630, 1, 0
        %v759 = vsel %vm631, 1, 0
        %v760 = vsel %vm632, 1, 0
        %v761 = vsel %vm633, 1, 0
        %v762 = vsel %vm634, 1, 0
        %v763 = vsel %vm635, 1, 0
        %v764 = vsel %vm636, 1, 0
        %v765 = vsel %vm637, 1, 0
        %v766 = vsel %vm638, 1, 0
        %v767 = vsel %vm639, 1, 0
        %v768 = vsel %vm640, 1, 0
        %v769 = vsel %vm641, 1, 0
        %v770 = vsel %vm642, 1, 0
        %v771 = vsel %vm643, 1, 0
        %v772 = vsel %vm644, 1, 0
        %v773 = vsel %vm645, 1, 0
        %v774 = vsel %vm646, 1, 0
        %v775 = vsel %vm647, 1, 0
        %v776 = vsel %vm648, 1, 0
        %v777 = vsel %vm649, 1, 0
        %v778 = vsel %vm650, 1, 0
        %v779 = vsel %vm651, 1, 0
        %v780 = vsel %vm652, 1, 0
        %v781 = vsel %vm653, 1, 0
        %v782 = vsel %vm654, 1, 0
        %v783 = vsel %vm655, 1, 0
        %v784 = vsel %vm656, 1, 0
        %v785 = vsel %vm657, 1, 0
        %v786 = vsel %vm658, 1, 0
        %v787 = vsel %vm659, 1, 0
        %v788 = vcvt.s32.f32 %v660
        %v789 = vcvt.s32.f32 %v661
        %v790 = vcvt.s32.f32 %v662
        %v791 = vcvt.s32.f32 %v663
        %v792 = vcvt.s32.f32 %v664
        %v793 = vcvt.s32.f32 %v665
        %v794 = vcvt.s32.f32 %v666
        %v795 = vcvt.s32.f32 %v667
        %v796 = vcvt.s32.f32 %v668
        %v797 = vcvt.s32.f32 %v669
        %v798 = vcvt.s32.f32 %v670
        %v799 = vcvt.s32.f32 %v671
        %v800 = vcvt.s32.f32 %v672
        %v801 = vcvt.s32.f32 %v673
        %v802 = vcvt.s32.f32 %v674
        %v803 = vcvt.s32.f32 %v675
        %v804 = vcvt.s32.f32 %v676
        %v805 = vcvt.s32.f32 %v677
        %v806 = vcvt.s32.f32 %v678
        %v807 = vcvt.s32.f32 %v679
        %v808 = vcvt.s32.f32 %v680
        %v809 = vcvt.s32.f32 %v681
        %v810 = vcvt.s32.f32 %v682
        %v811 = vcvt.s32.f32 %v683
        %v812 = vcvt.s32.f32 %v684
        %v813 = vcvt.s32.f32 %v685
        %v814 = vcvt.s32.f32 %v686
        %v815 = vcvt.s32.f32 %v687
        %v816 = vcvt.s32.f32 %v688
        %v817 = vcvt.s32.f32 %v689
        %v818 = vcvt.s32.f32 %v690
        %v819 = vcvt.s32.f32 %v691
        %v820 = vcvt.s32.f32 %v692
        %v821 = vcvt.s32.f32 %v693
        %v822 = vcvt.s32.f32 %v694
        %v823 = vcvt.s32.f32 %v695
        %v824 = vcvt.s32.f32 %v696
        %v825 = vcvt.s32.f32 %v697
        %v826 = vcvt.s32.f32 %v698
        %v827 = vcvt.s32.f32 %v699
        %v828 = vcvt.s32.f32 %v700
        %v829 = vcvt.s32.f32 %v701
        %v830 = vcvt.s32.f32 %v702
        %v831 = vcvt.s32.f32 %v703
        %v832 = vcvt.s32.f32 %v704
        %v833 = vcvt.s32.f32 %v705
        %v834 = vcvt.s32.f32 %v706
        %v835 = vcvt.s32.f32 %v707
        %v836 = vcvt.s32.f32 %v708
        %v837 = vcvt.s32.f32 %v709
        %v838 = vcvt.s32.f32 %v710
        %v839 = vcvt.s32.f32 %v711
        %v840 = vcvt.s32.f32 %v712
        %v841 = vcvt.s32.f32 %v713
        %v842 = vcvt.s32.f32 %v714
        %v843 = vcvt.s32.f32 %v715
        %v844 = vcvt.s32.f32 %v716
        %v845 = vcvt.s32.f32 %v717
        %v846 = vcvt.s32.f32 %v718
        %v847 = vcvt.s32.f32 %v719
        %v848 = vcvt.s32.f32 %v720
        %v849 = vcvt.s32.f32 %v721
        %v850 = vcvt.s32.f32 %v722
        %v851 = vcvt.s32.f32 %v723
        %v852 = vcvt.s32.f32 %v724
        %v853 = vcvt.s32.f32 %v725
        %v854 = vcvt.s32.f32 %v726
        %v855 = vcvt.s32.f32 %v727
        %v856 = vcvt.s32.f32 %v728
        %v857 = vcvt.s32.f32 %v729
        %v858 = vcvt.s32.f32 %v730
        %v859 = vcvt.s32.f32 %v731
        %v860 = vcvt.s32.f32 %v732
        %v861 = vcvt.s32.f32 %v733
        %v862 = vcvt.s32.f32 %v734
        %v863 = vcvt.s32.f32 %v735
        %v864 = vcvt.s32.f32 %v736
        %v865 = vcvt.s32.f32 %v737
        %v866 = vcvt.s32.f32 %v738
        %v867 = vcvt.s32.f32 %v739
        %v868 = vcvt.s32.f32 %v740
        %v869 = vcvt.s32.f32 %v741
        %v870 = vcvt.s32.f32 %v742
        %v871 = vcvt.s32.f32 %v743
        %v872 = vcvt.s32.f32 %v744
        %v873 = vcvt.s32.f32 %v745
        %v874 = vcvt.s32.f32 %v746
        %v875 = vcvt.s32.f32 %v747
        %v876 = vcvt.s32.f32 %v748
        %v877 = vcvt.s32.f32 %v749
        %v878 = vcvt.s32.f32 %v750
        %v879 = vcvt.s32.f32 %v751
        %v880 = vcvt.s32.f32 %v752
        %v881 = vcvt.s32.f32 %v753
        %v882 = vcvt.s32.f32 %v754
        %v883 = vcvt.s32.f32 %v755
        %v884 = vcvt.s32.f32 %v756
        %v885 = vcvt.s32.f32 %v757
        %v886 = vcvt.s32.f32 %v758
        %v887 = vcvt.s32.f32 %v759
        %v888 = vcvt.s32.f32 %v760
        %v889 = vcvt.s32.f32 %v761
        %v890 = vcvt.s32.f32 %v762
        %v891 = vcvt.s32.f32 %v763
        %v892 = vcvt.s32.f32 %v764
        %v893 = vcvt.s32.f32 %v765
        %v894 = vcvt.s32.f32 %v766
        %v895 = vcvt.s32.f32 %v767
        %v896 = vcvt.s32.f32 %v768
        %v897 = vcvt.s32.f32 %v769
        %v898 = vcvt.s32.f32 %v770
        %v899 = vcvt.s32.f32 %v771
        %v900 = vcvt.s32.f32 %v772
        %v901 = vcvt.s32.f32 %v773
        %v902 = vcvt.s32.f32 %v774
        %v903 = vcvt.s32.f32 %v775
        %v904 = vcvt.s32.f32 %v776
        %v905 = vcvt.s32.f32 %v777
        %v906 = vcvt.s32.f32 %v778
        %v907 = vcvt.s32.f32 %v779
        %v908 = vcvt.s32.f32 %v780
        %v909 = vcvt.s32.f32 %v781
        %v910 = vcvt.s32.f32 %v782
        %v911 = vcvt.s32.f32 %v783
        %v912 = vcvt.s32.f32 %v784
        %v913 = vcvt.s32.f32 %v785
        %v914 = vcvt.s32.f32 %v786
        %v915 = vcvt.s32.f32 %v787
        %916 = vmatprep.subr.mxu0 0.0
        %917 = vmatpush1.msra.mxu0 %v193
        %918 = vmatprep.subr.mxu0 0.0
        %919 = vmatpush1.msra.mxu0 %v194
        %920 = vmatprep.subr.mxu0 0.0
        %921 = vmatpush1.msra.mxu0 %v195
        %922 = vmatprep.subr.mxu0 0.0
        %923 = vmatpush1.msra.mxu0 %v196
        %924 = vmatprep.subr.mxu0 0.0
        %925 = vmatpush1.msra.mxu0 %v197
        %926 = vmatprep.subr.mxu0 0.0
        %927 = vmatpush1.msra.mxu0 %v198
        %928 = vmatprep.subr.mxu0 0.0
        %929 = vmatpush1.msra.mxu0 %v199
        %930 = vmatprep.subr.mxu0 0.0
        %931 = vmatpush1.msra.mxu0 %v200
        %932 = vmatprep.subr.mxu0 0.0
        %933 = vmatpush1.msra.mxu0 %v201
        %934 = vmatprep.subr.mxu0 0.0
        %935 = vmatpush1.msra.mxu0 %v202
        %936 = vmatprep.subr.mxu0 0.0
        %937 = vmatpush1.msra.mxu0 %v203
        %938 = vmatprep.subr.mxu0 0.0
        %939 = vmatpush1.msra.mxu0 %v204
        %940 = vmatprep.subr.mxu0 0.0
        %941 = vmatpush1.msra.mxu0 %v205
        %942 = vmatprep.subr.mxu0 0.0
        %943 = vmatpush1.msra.mxu0 %v206
        %944 = vmatprep.subr.mxu0 0.0
        %945 = vmatpush1.msra.mxu0 %v207
        %946 = vmatprep.subr.mxu0 0.0
        %947 = vmatpush1.msra.mxu0 %v208
        %948 = vmatprep.subr.mxu0 0.0
        %949 = vmatpush1.msra.mxu0 %v209
        %950 = vmatprep.subr.mxu0 0.0
        %951 = vmatpush1.msra.mxu0 %v210
        %952 = vmatprep.subr.mxu0 0.0
        %953 = vmatpush1.msra.mxu0 %v211
        %954 = vmatprep.subr.mxu0 0.0
        %955 = vmatpush1.msra.mxu0 %v212
        %956 = vmatprep.subr.mxu0 0.0
        %957 = vmatpush1.msra.mxu0 %v213
        %958 = vmatprep.subr.mxu0 0.0
        %959 = vmatpush1.msra.mxu0 %v214
        %960 = vmatprep.subr.mxu0 0.0
        %961 = vmatpush1.msra.mxu0 %v215
        %962 = vmatprep.subr.mxu0 0.0
        %963 = vmatpush1.msra.mxu0 %v216
        %964 = vmatprep.subr.mxu0 0.0
        %965 = vmatpush1.msra.mxu0 %v217
        %966 = vmatprep.subr.mxu0 0.0
        %967 = vmatpush1.msra.mxu0 %v218
        %968 = vmatprep.subr.mxu0 0.0
        %969 = vmatpush1.msra.mxu0 %v219
        %970 = vmatprep.subr.mxu0 0.0
        %971 = vmatpush1.msra.mxu0 %v220
        %972 = vmatprep.subr.mxu0 0.0
        %973 = vmatpush1.msra.mxu0 %v221
        %974 = vmatprep.subr.mxu0 0.0
        %975 = vmatpush1.msra.mxu0 %v222
        %976 = vmatprep.subr.mxu0 0.0
        %977 = vmatpush1.msra.mxu0 %v223
        %978 = vmatprep.subr.mxu0 0.0
        %979 = vmatpush1.msra.mxu0 %v224
        %980 = vmatprep.mubr.f32.mxu0 %v789
        %981 = vmatmul.mubr.f32.gmra.mrb[0].mxu0 %v788
        %v982 = vpop.f32.mrb[0].mxu0
        %v983 = vadd.f32 0.0, %v982
        %v984 = vpop.f32.mrb[0].mxu0
        %985 = vmatprep.mubr.f32.mxu0 %v791
        %986 = vmatmul.mubr.f32.gmra.mrb[0].mxu0 %v790
        %v987 = vpop.f32.mrb[0].mxu0
        %v988 = vadd.f32 0.0, %v987
        %v989 = vpop.f32.mrb[0].mxu0
        %990 = vmatprep.mubr.f32.mxu0 %v793
        %991 = vmatmul.mubr.f32.gmra.mrb[0].mxu0 %v792
        %v992 = vpop.f32.mrb[0].mxu0
        %v993 = vadd.f32 0.0, %v992
        %v994 = vpop.f32.mrb[0].mxu0
        %995 = vmatprep.mubr.f32.mxu0 %v795
        %996 = vmatmul.mubr.f32.gmra.mrb[0].mxu0 %v794
        %v997 = vpop.f32.mrb[0].mxu0
        %v998 = vadd.f32 0.0, %v997
        %v999 = vpop.f32.mrb[0].mxu0
        %1000 = vmatprep.mubr.f32.mxu0 %v797
        %1001 = vmatmul.mubr.f32.gmra.mrb[0].mxu0 %v796
        %v1002 = vpop.f32.mrb[0].mxu0
        %v1003 = vadd.f32 0.0, %v1002
        %v1004 = vpop.f32.mrb[0].mxu0
        %1005 = vmatprep.mubr.f32.mxu0 %v799
        %1006 = vmatmul.mubr.f32.gmra.mrb[0].mxu0 %v798
        %v1007 = vpop.f32.mrb[0].mxu0
        %v1008 = vadd.f32 0.0, %v1007
        %v1009 = vpop.f32.mrb[0].mxu0
        %1010 = vmatprep.mubr.f32.mxu0 %v801
        %1011 = vmatmul.mubr.f32.gmra.mrb[0].mxu0 %v800
        %v1012 = vpop.f32.mrb[0].mxu0
        %v1013 = vadd.f32 0.0, %v1012
        %v1014 = vpop.f32.mrb[0].mxu0
        %1015 = vmatprep.mubr.f32.mxu0 %v803
        %1016 = vmatmul.mubr.f32.gmra.mrb[0].mxu0 %v802
        %v1017 = vpop.f32.mrb[0].mxu0
        %v1018 = vadd.f32 0.0, %v1017
        %v1019 = vpop.f32.mrb[0].mxu0
        %1020 = vmatprep.mubr.f32.mxu0 %v805
        %1021 = vmatmul.mubr.f32.gmra.mrb[0].mxu0 %v804
        %v1022 = vpop.f32.mrb[0].mxu0
        %v1023 = vadd.f32 0.0, %v1022
        %v1024 = vpop.f32.mrb[0].mxu0
        %1025 = vmatprep.mubr.f32.mxu0 %v807
        %1026 = vmatmul.mubr.f32.gmra.mrb[0].mxu0 %v806
        %v1027 = vpop.f32.mrb[0].mxu0
        %v1028 = vadd.f32 0.0, %v1027
        %v1029 = vpop.f32.mrb[0].mxu0
        %1030 = vmatprep.mubr.f32.mxu0 %v809
        %1031 = vmatmul.mubr.f32.gmra.mrb[0].mxu0 %v808
        %v1032 = vpop.f32.mrb[0].mxu0
        %v1033 = vadd.f32 0.0, %v1032
        %v1034 = vpop.f32.mrb[0].mxu0
        %1035 = vmatprep.mubr.f32.mxu0 %v811
        %1036 = vmatmul.mubr.f32.gmra.mrb[0].mxu0 %v810
        %v1037 = vpop.f32.mrb[0].mxu0
        %v1038 = vadd.f32 0.0, %v1037
        %v1039 = vpop.f32.mrb[0].mxu0
        %1040 = vmatprep.mubr.f32.mxu0 %v813
        %1041 = vmatmul.mubr.f32.gmra.mrb[0].mxu0 %v812
        %v1042 = vpop.f32.mrb[0].mxu0
        %v1043 = vadd.f32 0.0, %v1042
        %v1044 = vpop.f32.mrb[0].mxu0
        %1045 = vmatprep.mubr.f32.mxu0 %v815
        %1046 = vmatmul.mubr.f32.gmra.mrb[0].mxu0 %v814
        %v1047 = vpop.f32.mrb[0].mxu0
        %v1048 = vadd.f32 0.0, %v1047
        %v1049 = vpop.f32.mrb[0].mxu0
        %1050 = vmatprep.mubr.f32.mxu0 %v817
        %1051 = vmatmul.mubr.f32.gmra.mrb[0].mxu0 %v816
        %v1052 = vpop.f32.mrb[0].mxu0
        %v1053 = vadd.f32 0.0, %v1052
        %v1054 = vpop.f32.mrb[0].mxu0
        %1055 = vmatprep.mubr.f32.mxu0 %v819
        %1056 = vmatmul.mubr.f32.gmra.mrb[0].mxu0 %v818
        %v1057 = vpop.f32.mrb[0].mxu0
        %v1058 = vadd.f32 0.0, %v1057
        %v1059 = vpop.f32.mrb[0].mxu0
        %1060 = vmatprep.mubr.f32.mxu0 %v821
        %1061 = vmatmul.mubr.f32.gmra.mrb[0].mxu0 %v820
        %v1062 = vpop.f32.mrb[0].mxu0
        %v1063 = vadd.f32 0.0, %v1062
        %v1064 = vpop.f32.mrb[0].mxu0
        %1065 = vmatprep.mubr.f32.mxu0 %v823
        %1066 = vmatmul.mubr.f32.gmra.mrb[0].mxu0 %v822
        %v1067 = vpop.f32.mrb[0].mxu0
        %v1068 = vadd.f32 0.0, %v1067
        %v1069 = vpop.f32.mrb[0].mxu0
        %1070 = vmatprep.mubr.f32.mxu0 %v825
        %1071 = vmatmul.mubr.f32.gmra.mrb[0].mxu0 %v824
        %v1072 = vpop.f32.mrb[0].mxu0
        %v1073 = vadd.f32 0.0, %v1072
        %v1074 = vpop.f32.mrb[0].mxu0
        %1075 = vmatprep.mubr.f32.mxu0 %v827
        %1076 = vmatmul.mubr.f32.gmra.mrb[0].mxu0 %v826
        %v1077 = vpop.f32.mrb[0].mxu0
        %v1078 = vadd.f32 0.0, %v1077
        %v1079 = vpop.f32.mrb[0].mxu0
        %1080 = vmatprep.mubr.f32.mxu0 %v829
        %1081 = vmatmul.mubr.f32.gmra.mrb[0].mxu0 %v828
        %v1082 = vpop.f32.mrb[0].mxu0
        %v1083 = vadd.f32 0.0, %v1082
        %v1084 = vpop.f32.mrb[0].mxu0
        %1085 = vmatprep.mubr.f32.mxu0 %v831
        %1086 = vmatmul.mubr.f32.gmra.mrb[0].mxu0 %v830
        %v1087 = vpop.f32.mrb[0].mxu0
        %v1088 = vadd.f32 0.0, %v1087
        %v1089 = vpop.f32.mrb[0].mxu0
        %1090 = vmatprep.mubr.f32.mxu0 %v833
        %1091 = vmatmul.mubr.f32.gmra.mrb[0].mxu0 %v832
        %v1092 = vpop.f32.mrb[0].mxu0
        %v1093 = vadd.f32 0.0, %v1092
        %v1094 = vpop.f32.mrb[0].mxu0
        %1095 = vmatprep.mubr.f32.mxu0 %v835
        %1096 = vmatmul.mubr.f32.gmra.mrb[0].mxu0 %v834
        %v1097 = vpop.f32.mrb[0].mxu0
        %v1098 = vadd.f32 0.0, %v1097
        %v1099 = vpop.f32.mrb[0].mxu0
        %1100 = vmatprep.mubr.f32.mxu0 %v837
        %1101 = vmatmul.mubr.f32.gmra.mrb[0].mxu0 %v836
        %v1102 = vpop.f32.mrb[0].mxu0
        %v1103 = vadd.f32 0.0, %v1102
        %v1104 = vpop.f32.mrb[0].mxu0
        %1105 = vmatprep.mubr.f32.mxu0 %v839
        %1106 = vmatmul.mubr.f32.gmra.mrb[0].mxu0 %v838
        %v1107 = vpop.f32.mrb[0].mxu0
        %v1108 = vadd.f32 0.0, %v1107
        %v1109 = vpop.f32.mrb[0].mxu0
        %1110 = vmatprep.mubr.f32.mxu0 %v841
        %1111 = vmatmul.mubr.f32.gmra.mrb[0].mxu0 %v840
        %v1112 = vpop.f32.mrb[0].mxu0
        %v1113 = vadd.f32 0.0, %v1112
        %v1114 = vpop.f32.mrb[0].mxu0
        %1115 = vmatprep.mubr.f32.mxu0 %v843
        %1116 = vmatmul.mubr.f32.gmra.mrb[0].mxu0 %v842
        %v1117 = vpop.f32.mrb[0].mxu0
        %v1118 = vadd.f32 0.0, %v1117
        %v1119 = vpop.f32.mrb[0].mxu0
        %1120 = vmatprep.mubr.f32.mxu0 %v845
        %1121 = vmatmul.mubr.f32.gmra.mrb[0].mxu0 %v844
        %v1122 = vpop.f32.mrb[0].mxu0
        %v1123 = vadd.f32 0.0, %v1122
        %v1124 = vpop.f32.mrb[0].mxu0
        %1125 = vmatprep.mubr.f32.mxu0 %v847
        %1126 = vmatmul.mubr.f32.gmra.mrb[0].mxu0 %v846
        %v1127 = vpop.f32.mrb[0].mxu0
        %v1128 = vadd.f32 0.0, %v1127
        %v1129 = vpop.f32.mrb[0].mxu0
        %1130 = vmatprep.mubr.f32.mxu0 %v849
        %1131 = vmatmul.mubr.f32.gmra.mrb[0].mxu0 %v848
        %v1132 = vpop.f32.mrb[0].mxu0
        %v1133 = vadd.f32 0.0, %v1132
        %v1134 = vpop.f32.mrb[0].mxu0
        %1135 = vmatprep.mubr.f32.mxu0 %v851
        %1136 = vmatmul.mubr.f32.gmra.mrb[0].mxu0 %v850
        %v1137 = vpop.f32.mrb[0].mxu0
        %v1138 = vadd.f32 0.0, %v1137
        %v1139 = vpop.f32.mrb[0].mxu0
        %1140 = vmatprep.mubr.f32.mxu0 %v853
        %1141 = vmatmul.mubr.f32.gmra.mrb[0].mxu0 %v852
        %v1142 = vpop.f32.mrb[0].mxu0
        %v1143 = vadd.f32 0.0, %v1142
        %v1144 = vpop.f32.mrb[0].mxu0
        %1145 = vmatprep.mubr.f32.mxu0 %v855
        %1146 = vmatmul.mubr.f32.gmra.mrb[0].mxu0 %v854
        %v1147 = vpop.f32.mrb[0].mxu0
        %v1148 = vadd.f32 0.0, %v1147
        %v1149 = vpop.f32.mrb[0].mxu0
        %1150 = vmatprep.mubr.f32.mxu0 %v857
        %1151 = vmatmul.mubr.f32.gmra.mrb[0].mxu0 %v856
        %v1152 = vpop.f32.mrb[0].mxu0
        %v1153 = vadd.f32 0.0, %v1152
        %v1154 = vpop.f32.mrb[0].mxu0
        %1155 = vmatprep.mubr.f32.mxu0 %v859
        %1156 = vmatmul.mubr.f32.gmra.mrb[0].mxu0 %v858
        %v1157 = vpop.f32.mrb[0].mxu0
        %v1158 = vadd.f32 0.0, %v1157
        %v1159 = vpop.f32.mrb[0].mxu0
        %1160 = vmatprep.mubr.f32.mxu0 %v861
        %1161 = vmatmul.mubr.f32.gmra.mrb[0].mxu0 %v860
        %v1162 = vpop.f32.mrb[0].mxu0
        %v1163 = vadd.f32 0.0, %v1162
        %v1164 = vpop.f32.mrb[0].mxu0
        %1165 = vmatprep.mubr.f32.mxu0 %v863
        %1166 = vmatmul.mubr.f32.gmra.mrb[0].mxu0 %v862
        %v1167 = vpop.f32.mrb[0].mxu0
        %v1168 = vadd.f32 0.0, %v1167
        %v1169 = vpop.f32.mrb[0].mxu0
        %1170 = vmatprep.mubr.f32.mxu0 %v865
        %1171 = vmatmul.mubr.f32.gmra.mrb[0].mxu0 %v864
        %v1172 = vpop.f32.mrb[0].mxu0
        %v1173 = vadd.f32 0.0, %v1172
        %v1174 = vpop.f32.mrb[0].mxu0
        %1175 = vmatprep.mubr.f32.mxu0 %v867
        %1176 = vmatmul.mubr.f32.gmra.mrb[0].mxu0 %v866
        %v1177 = vpop.f32.mrb[0].mxu0
        %v1178 = vadd.f32 0.0, %v1177
        %v1179 = vpop.f32.mrb[0].mxu0
        %1180 = vmatprep.mubr.f32.mxu0 %v869
        %1181 = vmatmul.mubr.f32.gmra.mrb[0].mxu0 %v868
        %v1182 = vpop.f32.mrb[0].mxu0
        %v1183 = vadd.f32 0.0, %v1182
        %v1184 = vpop.f32.mrb[0].mxu0
        %1185 = vmatprep.mubr.f32.mxu0 %v871
        %1186 = vmatmul.mubr.f32.gmra.mrb[0].mxu0 %v870
        %v1187 = vpop.f32.mrb[0].mxu0
        %v1188 = vadd.f32 0.0, %v1187
        %v1189 = vpop.f32.mrb[0].mxu0
        %1190 = vmatprep.mubr.f32.mxu0 %v873
        %1191 = vmatmul.mubr.f32.gmra.mrb[0].mxu0 %v872
        %v1192 = vpop.f32.mrb[0].mxu0
        %v1193 = vadd.f32 0.0, %v1192
        %v1194 = vpop.f32.mrb[0].mxu0
        %1195 = vmatprep.mubr.f32.mxu0 %v875
        %1196 = vmatmul.mubr.f32.gmra.mrb[0].mxu0 %v874
        %v1197 = vpop.f32.mrb[0].mxu0
        %v1198 = vadd.f32 0.0, %v1197
        %v1199 = vpop.f32.mrb[0].mxu0
        %1200 = vmatprep.mubr.f32.mxu0 %v877
        %1201 = vmatmul.mubr.f32.gmra.mrb[0].mxu0 %v876
        %v1202 = vpop.f32.mrb[0].mxu0
        %v1203 = vadd.f32 0.0, %v1202
        %v1204 = vpop.f32.mrb[0].mxu0
        %1205 = vmatprep.mubr.f32.mxu0 %v879
        %1206 = vmatmul.mubr.f32.gmra.mrb[0].mxu0 %v878
        %v1207 = vpop.f32.mrb[0].mxu0
        %v1208 = vadd.f32 0.0, %v1207
        %v1209 = vpop.f32.mrb[0].mxu0
        %1210 = vmatprep.mubr.f32.mxu0 %v881
        %1211 = vmatmul.mubr.f32.gmra.mrb[0].mxu0 %v880
        %v1212 = vpop.f32.mrb[0].mxu0
        %v1213 = vadd.f32 0.0, %v1212
        %v1214 = vpop.f32.mrb[0].mxu0
        %1215 = vmatprep.mubr.f32.mxu0 %v883
        %1216 = vmatmul.mubr.f32.gmra.mrb[0].mxu0 %v882
        %v1217 = vpop.f32.mrb[0].mxu0
        %v1218 = vadd.f32 0.0, %v1217
        %v1219 = vpop.f32.mrb[0].mxu0
        %1220 = vmatprep.mubr.f32.mxu0 %v885
        %1221 = vmatmul.mubr.f32.gmra.mrb[0].mxu0 %v884
        %v1222 = vpop.f32.mrb[0].mxu0
        %v1223 = vadd.f32 0.0, %v1222
        %v1224 = vpop.f32.mrb[0].mxu0
        %1225 = vmatprep.mubr.f32.mxu0 %v887
        %1226 = vmatmul.mubr.f32.gmra.mrb[0].mxu0 %v886
        %v1227 = vpop.f32.mrb[0].mxu0
        %v1228 = vadd.f32 0.0, %v1227
        %v1229 = vpop.f32.mrb[0].mxu0
        %1230 = vmatprep.mubr.f32.mxu0 %v889
        %1231 = vmatmul.mubr.f32.gmra.mrb[0].mxu0 %v888
        %v1232 = vpop.f32.mrb[0].mxu0
        %v1233 = vadd.f32 0.0, %v1232
        %v1234 = vpop.f32.mrb[0].mxu0
        %1235 = vmatprep.mubr.f32.mxu0 %v891
        %1236 = vmatmul.mubr.f32.gmra.mrb[0].mxu0 %v890
        %v1237 = vpop.f32.mrb[0].mxu0
        %v1238 = vadd.f32 0.0, %v1237
        %v1239 = vpop.f32.mrb[0].mxu0
        %1240 = vmatprep.mubr.f32.mxu0 %v893
        %1241 = vmatmul.mubr.f32.gmra.mrb[0].mxu0 %v892
        %v1242 = vpop.f32.mrb[0].mxu0
        %v1243 = vadd.f32 0.0, %v1242
        %v1244 = vpop.f32.mrb[0].mxu0
        %1245 = vmatprep.mubr.f32.mxu0 %v895
        %1246 = vmatmul.mubr.f32.gmra.mrb[0].mxu0 %v894
        %v1247 = vpop.f32.mrb[0].mxu0
        %v1248 = vadd.f32 0.0, %v1247
        %v1249 = vpop.f32.mrb[0].mxu0
        %1250 = vmatprep.mubr.f32.mxu0 %v897
        %1251 = vmatmul.mubr.f32.gmra.mrb[0].mxu0 %v896
        %v1252 = vpop.f32.mrb[0].mxu0
        %v1253 = vadd.f32 0.0, %v1252
        %v1254 = vpop.f32.mrb[0].mxu0
        %1255 = vmatprep.mubr.f32.mxu0 %v899
        %1256 = vmatmul.mubr.f32.gmra.mrb[0].mxu0 %v898
        %v1257 = vpop.f32.mrb[0].mxu0
        %v1258 = vadd.f32 0.0, %v1257
        %v1259 = vpop.f32.mrb[0].mxu0
        %1260 = vmatprep.mubr.f32.mxu0 %v901
        %1261 = vmatmul.mubr.f32.gmra.mrb[0].mxu0 %v900
        %v1262 = vpop.f32.mrb[0].mxu0
        %v1263 = vadd.f32 0.0, %v1262
        %v1264 = vpop.f32.mrb[0].mxu0
        %1265 = vmatprep.mubr.f32.mxu0 %v903
        %1266 = vmatmul.mubr.f32.gmra.mrb[0].mxu0 %v902
        %v1267 = vpop.f32.mrb[0].mxu0
        %v1268 = vadd.f32 0.0, %v1267
        %v1269 = vpop.f32.mrb[0].mxu0
        %1270 = vmatprep.mubr.f32.mxu0 %v905
        %1271 = vmatmul.mubr.f32.gmra.mrb[0].mxu0 %v904
        %v1272 = vpop.f32.mrb[0].mxu0
        %v1273 = vadd.f32 0.0, %v1272
        %v1274 = vpop.f32.mrb[0].mxu0
        %1275 = vmatprep.mubr.f32.mxu0 %v907
        %1276 = vmatmul.mubr.f32.gmra.mrb[0].mxu0 %v906
        %v1277 = vpop.f32.mrb[0].mxu0
        %v1278 = vadd.f32 0.0, %v1277
        %v1279 = vpop.f32.mrb[0].mxu0
        %1280 = vmatprep.mubr.f32.mxu0 %v909
        %1281 = vmatmul.mubr.f32.gmra.mrb[0].mxu0 %v908
        %v1282 = vpop.f32.mrb[0].mxu0
        %v1283 = vadd.f32 0.0, %v1282
        %v1284 = vpop.f32.mrb[0].mxu0
        %1285 = vmatprep.mubr.f32.mxu0 %v911
        %1286 = vmatmul.mubr.f32.gmra.mrb[0].mxu0 %v910
        %v1287 = vpop.f32.mrb[0].mxu0
        %v1288 = vadd.f32 0.0, %v1287
        %v1289 = vpop.f32.mrb[0].mxu0
        %1290 = vmatprep.mubr.f32.mxu0 %v913
        %1291 = vmatmul.mubr.f32.gmra.mrb[0].mxu0 %v912
        %v1292 = vpop.f32.mrb[0].mxu0
        %v1293 = vadd.f32 0.0, %v1292
        %v1294 = vpop.f32.mrb[0].mxu0
        %1295 = vmatprep.mubr.f32.mxu0 %v915
        %1296 = vmatmul.mubr.f32.gmra.mrb[0].mxu0 %v914
        %v1297 = vpop.f32.mrb[0].mxu0
        %v1298 = vadd.f32 0.0, %v1297
        %v1299 = vpop.f32.mrb[0].mxu0
        %1300 = vdwg.mxu0
        %1317 = vrot.lane.b32.xlu0 %v1063, 32
        %v1318 = vpop.permute.xlu0 %1317
        %1319 = vrot.lane.b32.xlu0 %v1068, 32
        %v1320 = vpop.permute.xlu0 %1319
        %1321 = vrot.lane.b32.xlu0 %v1073, 32
        %v1322 = vpop.permute.xlu0 %1321
        %1323 = vrot.lane.b32.xlu0 %v1078, 32
        %v1324 = vpop.permute.xlu0 %1323
        %1325 = vrot.lane.b32.xlu0 %v1083, 32
        %v1326 = vpop.permute.xlu0 %1325
        %1327 = vrot.lane.b32.xlu0 %v1088, 32
        %v1328 = vpop.permute.xlu0 %1327
        %1329 = vrot.lane.b32.xlu0 %v1093, 32
        %v1330 = vpop.permute.xlu0 %1329
        %1331 = vrot.lane.b32.xlu0 %v1098, 32
        %v1332 = vpop.permute.xlu0 %1331
        %1333 = vrot.lane.b32.xlu0 %v1103, 32
        %v1334 = vpop.permute.xlu0 %1333
        %1335 = vrot.lane.b32.xlu0 %v1108, 32
        %v1336 = vpop.permute.xlu0 %1335
        %1337 = vrot.lane.b32.xlu0 %v1113, 32
        %v1338 = vpop.permute.xlu0 %1337
        %1339 = vrot.lane.b32.xlu0 %v1118, 32
        %v1340 = vpop.permute.xlu0 %1339
        %1341 = vrot.lane.b32.xlu0 %v1123, 32
        %v1342 = vpop.permute.xlu0 %1341
        %1343 = vrot.lane.b32.xlu0 %v1128, 32
        %v1344 = vpop.permute.xlu0 %1343
        %1345 = vrot.lane.b32.xlu0 %v1133, 32
        %v1346 = vpop.permute.xlu0 %1345
        %1347 = vrot.lane.b32.xlu0 %v1138, 32
        %v1348 = vpop.permute.xlu0 %1347
        %1381 = vrot.lane.b32.xlu0 %v1143, 64
        %v1382 = vpop.permute.xlu0 %1381
        %1383 = vrot.lane.b32.xlu0 %v1148, 64
        %v1384 = vpop.permute.xlu0 %1383
        %1385 = vrot.lane.b32.xlu0 %v1153, 64
        %v1386 = vpop.permute.xlu0 %1385
        %1387 = vrot.lane.b32.xlu0 %v1158, 64
        %v1388 = vpop.permute.xlu0 %1387
        %1389 = vrot.lane.b32.xlu0 %v1163, 64
        %v1390 = vpop.permute.xlu0 %1389
        %1391 = vrot.lane.b32.xlu0 %v1168, 64
        %v1392 = vpop.permute.xlu0 %1391
        %1393 = vrot.lane.b32.xlu0 %v1173, 64
        %v1394 = vpop.permute.xlu0 %1393
        %1395 = vrot.lane.b32.xlu0 %v1178, 64
        %v1396 = vpop.permute.xlu0 %1395
        %1397 = vrot.lane.b32.xlu0 %v1183, 64
        %v1398 = vpop.permute.xlu0 %1397
        %1399 = vrot.lane.b32.xlu0 %v1188, 64
        %v1400 = vpop.permute.xlu0 %1399
        %1401 = vrot.lane.b32.xlu0 %v1193, 64
        %v1402 = vpop.permute.xlu0 %1401
        %1403 = vrot.lane.b32.xlu0 %v1198, 64
        %v1404 = vpop.permute.xlu0 %1403
        %1405 = vrot.lane.b32.xlu0 %v1203, 64
        %v1406 = vpop.permute.xlu0 %1405
        %1407 = vrot.lane.b32.xlu0 %v1208, 64
        %v1408 = vpop.permute.xlu0 %1407
        %1409 = vrot.lane.b32.xlu0 %v1213, 64
        %v1410 = vpop.permute.xlu0 %1409
        %1411 = vrot.lane.b32.xlu0 %v1218, 64
        %v1412 = vpop.permute.xlu0 %1411
        %1445 = vrot.lane.b32.xlu0 %v1223, 96
        %v1446 = vpop.permute.xlu0 %1445
        %1447 = vrot.lane.b32.xlu0 %v1228, 96
        %v1448 = vpop.permute.xlu0 %1447
        %1449 = vrot.lane.b32.xlu0 %v1233, 96
        %v1450 = vpop.permute.xlu0 %1449
        %1451 = vrot.lane.b32.xlu0 %v1238, 96
        %v1452 = vpop.permute.xlu0 %1451
        %1453 = vrot.lane.b32.xlu0 %v1243, 96
        %v1454 = vpop.permute.xlu0 %1453
        %1455 = vrot.lane.b32.xlu0 %v1248, 96
        %v1456 = vpop.permute.xlu0 %1455
        %1457 = vrot.lane.b32.xlu0 %v1253, 96
        %v1458 = vpop.permute.xlu0 %1457
        %1459 = vrot.lane.b32.xlu0 %v1258, 96
        %v1460 = vpop.permute.xlu0 %1459
        %1461 = vrot.lane.b32.xlu0 %v1263, 96
        %v1462 = vpop.permute.xlu0 %1461
        %1463 = vrot.lane.b32.xlu0 %v1268, 96
        %v1464 = vpop.permute.xlu0 %1463
        %1465 = vrot.lane.b32.xlu0 %v1273, 96
        %v1466 = vpop.permute.xlu0 %1465
        %1467 = vrot.lane.b32.xlu0 %v1278, 96
        %v1468 = vpop.permute.xlu0 %1467
        %1469 = vrot.lane.b32.xlu0 %v1283, 96
        %v1470 = vpop.permute.xlu0 %1469
        %1471 = vrot.lane.b32.xlu0 %v1288, 96
        %v1472 = vpop.permute.xlu0 %1471
        %1473 = vrot.lane.b32.xlu0 %v1293, 96
        %v1474 = vpop.permute.xlu0 %1473
        %1475 = vrot.lane.b32.xlu0 %v1298, 96
        %v1476 = vpop.permute.xlu0 %1475
        %vm1493 = vcmask 261120
        %v1494 = vsel %vm1493, %v983, %v1318
        %v1495 = vsel %vm1493, %v988, %v1320
        %v1496 = vsel %vm1493, %v993, %v1322
        %v1497 = vsel %vm1493, %v998, %v1324
        %v1498 = vsel %vm1493, %v1003, %v1326
        %v1499 = vsel %vm1493, %v1008, %v1328
        %v1500 = vsel %vm1493, %v1013, %v1330
        %v1501 = vsel %vm1493, %v1018, %v1332
        %v1502 = vsel %vm1493, %v1023, %v1334
        %v1503 = vsel %vm1493, %v1028, %v1336
        %v1504 = vsel %vm1493, %v1033, %v1338
        %v1505 = vsel %vm1493, %v1038, %v1340
        %v1506 = vsel %vm1493, %v1043, %v1342
        %v1507 = vsel %vm1493, %v1048, %v1344
        %v1508 = vsel %vm1493, %v1053, %v1346
        %v1509 = vsel %vm1493, %v1058, %v1348
        %vm1510 = vcmask 523264
        %v1511 = vsel %vm1510, %v1494, %v1382
        %v1512 = vsel %vm1510, %v1495, %v1384
        %v1513 = vsel %vm1510, %v1496, %v1386
        %v1514 = vsel %vm1510, %v1497, %v1388
        %v1515 = vsel %vm1510, %v1498, %v1390
        %v1516 = vsel %vm1510, %v1499, %v1392
        %v1517 = vsel %vm1510, %v1500, %v1394
        %v1518 = vsel %vm1510, %v1501, %v1396
        %v1519 = vsel %vm1510, %v1502, %v1398
        %v1520 = vsel %vm1510, %v1503, %v1400
        %v1521 = vsel %vm1510, %v1504, %v1402
        %v1522 = vsel %vm1510, %v1505, %v1404
        %v1523 = vsel %vm1510, %v1506, %v1406
        %v1524 = vsel %vm1510, %v1507, %v1408
        %v1525 = vsel %vm1510, %v1508, %v1410
        %v1526 = vsel %vm1510, %v1509, %v1412
        %vm1527 = vcmask 785408
        %v1528 = vsel %vm1527, %v1511, %v1446
        %v1529 = vsel %vm1527, %v1512, %v1448
        %v1530 = vsel %vm1527, %v1513, %v1450
        %v1531 = vsel %vm1527, %v1514, %v1452
        %v1532 = vsel %vm1527, %v1515, %v1454
        %v1533 = vsel %vm1527, %v1516, %v1456
        %v1534 = vsel %vm1527, %v1517, %v1458
        %v1535 = vsel %vm1527, %v1518, %v1460
        %v1536 = vsel %vm1527, %v1519, %v1462
        %v1537 = vsel %vm1527, %v1520, %v1464
        %v1538 = vsel %vm1527, %v1521, %v1466
        %v1539 = vsel %vm1527, %v1522, %v1468
        %v1540 = vsel %vm1527, %v1523, %v1470
        %v1541 = vsel %vm1527, %v1524, %v1472
        %v1542 = vsel %vm1527, %v1525, %v1474
        %v1543 = vsel %vm1527, %v1526, %v1476
        %1544 = vst [vmem:[%s176] sm:$0xff] %v1528
        %1545 = vst [vmem:[%s176 + $0x8] sm:$0xff] %v1529
        %1546 = vst [vmem:[%s176 + $0x10] sm:$0xff] %v1530
        %1547 = vst [vmem:[%s176 + $0x18] sm:$0xff] %v1531
        %1548 = vst [vmem:[%s176 + $0x20] sm:$0xff] %v1532
        %1549 = vst [vmem:[%s176 + $0x28] sm:$0xff] %v1533
        %1550 = vst [vmem:[%s176 + $0x30] sm:$0xff] %v1534
        %1551 = vst [vmem:[%s176 + $0x38] sm:$0xff] %v1535
        %1552 = vst [vmem:[%s176 + $0x40] sm:$0xff] %v1536
        %1553 = vst [vmem:[%s176 + $0x48] sm:$0xff] %v1537
        %1554 = vst [vmem:[%s176 + $0x50] sm:$0xff] %v1538
        %1555 = vst [vmem:[%s176 + $0x58] sm:$0xff] %v1539
        %1556 = vst [vmem:[%s176 + $0x60] sm:$0xff] %v1540
        %1557 = vst [vmem:[%s176 + $0x68] sm:$0xff] %v1541
        %1558 = vst [vmem:[%s176 + $0x70] sm:$0xff] %v1542
        %1559 = vst [vmem:[%s176 + $0x78] sm:$0xff] %v1543
        %s1560 = sand.u32 %s92, 1
        %s1561 = scalar_lea.sflag [#allocation3], %s1560
        %s1562 = sand.u32 %s92, 1
        %s1563 = smul.addr %s1562, 128
        %s1564 = scalar_lea.vmem [#allocation2], %s1563
        // Predicated region
        $region29: #{tpu_custom_call.1} parent=27 // pred_check
          %p1565 = pneg %p102
        $region30: #{tpu_custom_call.1} parent=27 // pred_check_branch
          %1567 = sbr.rel (%p1565) target = $region32
        $region31: #{tpu_custom_call.1} parent=27 // pred_region
          %s1568 = smul.u32 16, %s21
          %s1570 = ssub.s32 2048, 2048
          %1571 = vsyncadd %s1561, %s1570
          %s1572 = smul.addr %s20, 32
          %s1573 = sadd.s32 %s1568, %s1572
          %s1574 = smul.addr %s1573, 128
          %s1575 = scalar_lea.hbm %s2, %s1574
          %s1576 = sshll.u32 %s1564, 4
          %s1577 = int_to_ptr.vmem [resolvable:$true] %s1576
          %1582 = dma.vmem_to_hbm [thread:$0]  %s1577, 2048, %s1575, %s1561, 128, 128, 8
        $region32: #{tpu_custom_call.1} parent=27 // pred_fallthru
          _
      $region28: #{tpu_custom_call.1} parent=5 // pred_fallthru
        _
      %p1583 = scmp.le.s32.totalorder 2, %s11
      // Predicated region
      $region33: #{tpu_custom_call.1} parent=5 // pred_check
        %p1584 = pneg %p1583
      $region34: #{tpu_custom_call.1} parent=5 // pred_check_branch
        %1586 = sbr.rel (%p1584) target = $region36
      $region35: #{tpu_custom_call.1} parent=5 // pred_region
        %s1587 = ssub.s32 %s11, 2
        // Predicated region
        $region37: #{tpu_custom_call.1} parent=35 // pred_check
          %p1588 = pneg %p108
        $region38: #{tpu_custom_call.1} parent=35 // pred_check_branch
          %1590 = sbr.rel (%p1588) target = $region40
        $region39: #{tpu_custom_call.1} parent=35 // pred_region
          %s1591 = sand.u32 %s93, 1
          %s1592 = scalar_lea.sflag [#allocation3], %s1591
          %s1593 = sand.u32 %s93, 1
          %s1594 = smul.addr %s1593, 128
          %s1595 = scalar_lea.vmem [#allocation2], %s1594
          %1596 = dma.done %s1592, 2048
        $region40: #{tpu_custom_call.1} parent=35 // pred_fallthru
          _
      $region36: #{tpu_custom_call.1} parent=5 // pred_fallthru
        _
    $region6: #{tpu_custom_call.1} parent=1 // loop_footer
      %s15 = sadd.s32 1, %s11
    $region7: #{tpu_custom_call.1} parent=1 // loop_footer_branch
      %10 = sbr.rel target = $region3
    $region8: #{tpu_custom_call.1} parent=1 // loop_exit
      _
    %1597 = vsyncpa [#allocation3], 1
    %s1598 = scalar_lea.sflag [#allocation3], 1
    %1599 = vsyncpa %s1598, 1

</llo_original>
